<compile_context>
chip_gen: v5e
topology: v5e:2x2
jax: 0.10.0
libtpu: 0.0.40
codegen_flags: <defaults>
</compile_context>

<pallas_src>
import functools

import jax
import jax.numpy as jnp
from jax.experimental import pallas as pl
from jax.experimental.pallas import tpu as pltpu


# ----------------------------------------------------------------------------
# helpers
# ----------------------------------------------------------------------------
def _round_up(x, m):
    return (x + m - 1) // m * m


def _vmem_capacity_bytes():
    """Generation-aware VMEM capacity (falls back to 128 MiB)."""
    try:
        return int(pltpu.get_tpu_info().vmem_capacity_bytes)
    except Exception:
        return 128 << 20


def _lstm_tile_bytes(T, TB, E, Hp, fused):
    """Per-tile VMEM footprint estimate, incl. double-buffered weights and
    per-step gate temporaries (previous estimate undercounted these)."""
    bf2, f4 = 2, 4
    n = 2 * T * TB * E * bf2                            # x tile (double buffered)
    n += T * TB * 4 * Hp * bf2                          # xg scratch (bf16)
    n += 2 * ((E + Hp) * 4 * Hp * bf2 + 4 * Hp * f4)    # weights + bias (dbl buf)
    n += 3 * TB * 4 * Hp * f4                           # per-step gate temporaries
    n += 4 * TB * Hp * f4                               # h / c carries + temps
    if fused:
        n += T * TB * Hp * bf2                          # hs scratch (VMEM only)
        n += 2 * T * TB * Hp * bf2                      # gathered W_out tile (dbl)
        n += T * TB * Hp * f4                           # f32 product in epilogue
        n += 4 * T * TB * f4                            # bias tile + pred out tile
    else:
        n += 2 * T * TB * Hp * bf2                      # hidden-state out tile (dbl)
    return n


def _pick_batch_tile(Bp, T, E, Hp, fused, budget, prefer_two_tiles):
    """Largest batch tile (multiple of 8, divides Bp, <=256) under the budget.

    Cap is 256 (fills the v6e/v7x 256-wide MXU rows).  On 64 MiB-VMEM parts
    (v7x proxy) we additionally prefer >=2 tiles so both TensorCores get work.
    """
    cap = min(Bp, 256)
    if prefer_two_tiles and Bp >= 16:
        cap = min(cap, Bp // 2)
    tb = cap - cap % 8
    while tb > 8:
        if Bp % tb == 0 and _lstm_tile_bytes(T, tb, E, Hp, fused) <= budget:
            return tb
        tb -= 8
    # TODO(synk): tile T as well (chunked recurrence with carried h/c) if even
    # TB=8 does not fit for very long sequences.
    return 8


def _prep_lstm_weights(w_ih, w_hh, b_ih, b_hh, Hp, e_in):
    """Pad PyTorch-layout LSTM weights so every gate block is Hp(=mult of 128)
    wide; padded rows/cols and biases are zero so padded hidden units stay 0."""
    h = w_hh.shape[1]
    in_size = w_ih.shape[1]
    w_ih4 = jnp.pad(w_ih.reshape(4, h, in_size),
                    ((0, 0), (0, Hp - h), (0, e_in - in_size)))
    wih_t = jnp.transpose(w_ih4.reshape(4 * Hp, e_in)).astype(jnp.bfloat16)  # (E,4Hp)
    w_hh4 = jnp.pad(w_hh.reshape(4, h, h), ((0, 0), (0, Hp - h), (0, Hp - h)))
    whh_t = jnp.transpose(w_hh4.reshape(4 * Hp, Hp)).astype(jnp.bfloat16)    # (Hp,4Hp)
    bias = jnp.pad((b_ih + b_hh).reshape(4, h), ((0, 0), (0, Hp - h)))
    bias = bias.reshape(1, 4 * Hp).astype(jnp.float32)
    return wih_t, whh_t, bias


# ----------------------------------------------------------------------------
# Pallas kernels
# ----------------------------------------------------------------------------
def _lstm_common(x_ref, wih_ref, whh_ref, b_ref, xg_ref, store, *, split):
    """Shared LSTM body: hoisted input projection + serial recurrence.

    x_ref   : (T, TB, E)    bf16 time-major inputs
    wih_ref : (E, 4Hp)      bf16 W_ih^T (gate-padded)
    whh_ref : (Hp, 4Hp)     bf16 W_hh^T (gate-padded)
    b_ref   : (1, 4Hp)      f32  b_ih + b_hh (gate-padded, zeros in padding)
    xg_ref  : (T*TB, 4Hp)   bf16 VMEM scratch: precomputed x @ W_ih + b
    store(t, h_bf16)        callback writing the (TB, Hp) step-t hidden state
    """
    T, TB, E = x_ref.shape
    Hp = whh_ref.shape[0]

    # --- Stage 1: input projection hoisted out of the recurrence ------------
    # One large (T*TB, E) x (E, 4Hp) MXU matmul; bias broadcast folded once.
    x2 = x_ref[...].reshape(T * TB, E)
    xg = jnp.dot(x2, wih_ref[...], preferred_element_type=jnp.float32) + b_ref[...]
    xg_ref[...] = xg.astype(xg_ref.dtype)          # bf16 scratch (halves VMEM)

    whh = whh_ref[...]                             # hoist recurrent-weight load

    # TODO(synk): compute the gate nonlinearities in bf16 on v6e/v7x (bf16 EUP)
    # while keeping f32 on v5e; kept f32 everywhere for numerical safety.
    def gates_to_hc(gates, c):
        i = jax.nn.sigmoid(gates[:, 0 * Hp:1 * Hp])
        f = jax.nn.sigmoid(gates[:, 1 * Hp:2 * Hp])
        g = jnp.tanh(gates[:, 2 * Hp:3 * Hp])
        o = jax.nn.sigmoid(gates[:, 3 * Hp:4 * Hp])
        c_new = f * c + i * g
        h_new = (o * jnp.tanh(c_new)).astype(jnp.bfloat16)   # cast once; reused
        return h_new, c_new

    if split:
        # Two independent (h, c) carries: the MXU matmul of one sub-tile
        # overlaps the EUP sigmoid/tanh of the other.
        half = TB // 2

        def body(t, carry):
            ha, ca, hb, cb = carry
            ra = pl.multiple_of(t * TB, TB)
            rb = pl.multiple_of(t * TB + half, half)
            ga = xg_ref[pl.ds(ra, half), :] + jnp.dot(
                ha, whh, preferred_element_type=jnp.float32)
            gb = xg_ref[pl.ds(rb, half), :] + jnp.dot(
                hb, whh, preferred_element_type=jnp.float32)
            ha, ca = gates_to_hc(ga, ca)
            hb, cb = gates_to_hc(gb, cb)
            store(t, jnp.concatenate([ha, hb], axis=0))
            return ha, ca, hb, cb

        init = (jnp.zeros((half, Hp), jnp.bfloat16),
                jnp.zeros((half, Hp), jnp.float32),
                jnp.zeros((half, Hp), jnp.bfloat16),
                jnp.zeros((half, Hp), jnp.float32))
    else:
        def body(t, carry):
            h, c = carry
            r = pl.multiple_of(t * TB, TB)
            gates = xg_ref[pl.ds(r, TB), :] + jnp.dot(
                h, whh, preferred_element_type=jnp.float32)
            h, c = gates_to_hc(gates, c)
            store(t, h)
            return h, c

        init = (jnp.zeros((TB, Hp), jnp.bfloat16),
                jnp.zeros((TB, Hp), jnp.float32))

    unroll = max(1, T if T <= 16 else 4)
    jax.lax.fori_loop(0, T, body, init, unroll=unroll)


def _lstm_layer_kernel(x_ref, wih_ref, whh_ref, b_ref, out_ref, xg_ref, *, split):
    """LSTM layer that writes all hidden states (used for non-final layers)."""
    def store(t, h):
        out_ref[t] = h
    _lstm_common(x_ref, wih_ref, whh_ref, b_ref, xg_ref, store, split=split)


def _lstm_head_kernel(x_ref, wih_ref, whh_ref, b_ref, wt_ref, bt_ref, out_ref,
                      xg_ref, hs_ref, *, split):
    """Final LSTM layer with the output head fused into the epilogue.

    Hidden states stay in the hs VMEM scratch (never hit HBM); the head is a
    per-row dot with the pre-gathered W_out[target] rows.

    wt_ref  : (T, TB, Hp) bf16  gathered output-weight rows (time-major)
    bt_ref  : (T, TB, 1)  f32   gathered output bias
    out_ref : (T, TB, 1)  f32   sigmoid predictions
    hs_ref  : (T, TB, Hp) bf16  VMEM scratch for hidden states
    """
    def store(t, h):
        hs_ref[t] = h
    _lstm_common(x_ref, wih_ref, whh_ref, b_ref, xg_ref, store, split=split)

    prod = hs_ref[...].astype(jnp.float32) * wt_ref[...].astype(jnp.float32)
    logit = jnp.sum(prod, axis=-1, keepdims=True) + bt_ref[...]
    out_ref[...] = jax.nn.sigmoid(logit)


# ----------------------------------------------------------------------------
# pallas_call wrapper
# ----------------------------------------------------------------------------
def lstm_layer(x_tbe, layer, Hp, head=None):
    """One LSTM layer over a time-major (T, Bp, E_in) bf16 input.

    If `head=(w_tgt, b_tgt)` is given (last layer), returns (T, Bp, 1) f32
    sigmoid predictions with the output head fused in; otherwise returns
    (T, Bp, Hp) bf16 hidden states.
    """
    T, Bp, E_in = x_tbe.shape
    assert Bp % 8 == 0
    wih_t, whh_t, bias = _prep_lstm_weights(
        layer["w_ih"], layer["w_hh"], layer["b_ih"], layer["b_hh"], Hp, E_in)

    fused = head is not None
    vmem_cap = _vmem_capacity_bytes()
    budget = (vmem_cap * 3) // 8                      # ~24 MiB v7x, ~48 MiB v5e/v6e
    TB = _pick_batch_tile(Bp, T, E_in, Hp, fused, budget,
                          prefer_two_tiles=vmem_cap <= (64 << 20))
    need = _lstm_tile_bytes(T, TB, E_in, Hp, fused)
    vmem_limit = int(min(max(2 * need, 16 << 20), (vmem_cap * 3) // 4))
    split = TB >= 16 and TB % 16 == 0
    grid = (Bp // TB,)

    x_tbe = x_tbe.astype(jnp.bfloat16)
    common_in_specs = [
        pl.BlockSpec((T, TB, E_in), lambda b: (0, b, 0)),
        pl.BlockSpec((E_in, 4 * Hp), lambda b: (0, 0)),
        pl.BlockSpec((Hp, 4 * Hp), lambda b: (0, 0)),
        pl.BlockSpec((1, 4 * Hp), lambda b: (0, 0)),
    ]
    xg_scratch = pltpu.VMEM((T * TB, 4 * Hp), jnp.bfloat16)
    compiler_params = pltpu.CompilerParams(
        dimension_semantics=("parallel",),
        vmem_limit_bytes=vmem_limit,
    )

    if not fused:
        return pl.pallas_call(
            functools.partial(_lstm_layer_kernel, split=split),
            out_shape=jax.ShapeDtypeStruct((T, Bp, Hp), jnp.bfloat16),
            grid_spec=pltpu.PrefetchScalarGridSpec(
                num_scalar_prefetch=0,
                grid=grid,
                in_specs=common_in_specs,
                out_specs=pl.BlockSpec((T, TB, Hp), lambda b: (0, b, 0)),
                scratch_shapes=[xg_scratch],
            ),
            compiler_params=compiler_params,
        )(x_tbe, wih_t, whh_t, bias)

    w_tgt, b_tgt = head
    return pl.pallas_call(
        functools.partial(_lstm_head_kernel, split=split),
        out_shape=jax.ShapeDtypeStruct((T, Bp, 1), jnp.float32),
        grid_spec=pltpu.PrefetchScalarGridSpec(
            num_scalar_prefetch=0,
            grid=grid,
            in_specs=common_in_specs + [
                pl.BlockSpec((T, TB, Hp), lambda b: (0, b, 0)),
                pl.BlockSpec((T, TB, 1), lambda b: (0, b, 0)),
            ],
            out_specs=pl.BlockSpec((T, TB, 1), lambda b: (0, b, 0)),
            scratch_shapes=[xg_scratch, pltpu.VMEM((T, TB, Hp), jnp.bfloat16)],
        ),
        compiler_params=compiler_params,
    )(x_tbe, wih_t, whh_t, bias,
      w_tgt.astype(jnp.bfloat16), b_tgt.astype(jnp.float32))


# ----------------------------------------------------------------------------
# DKT forward (glue in plain JAX, hot path in Pallas)
# ----------------------------------------------------------------------------
@functools.partial(jax.jit, static_argnames=("n_skills",))
def dkt_forward(params, input_array, *, n_skills):
    """input_array: (B, 3, L) int32; rows are [seq, <unused>, labels].

    Assumes every sequence has full length L (equal-length batch), which makes
    pack_padded_sequence(lengths - 1) equivalent to truncating to L-1 steps.
    """
    seq = input_array[:, 0]        # (B, L)
    labels = input_array[:, 2]     # (B, L)
    B, L = seq.shape
    T = L - 1
    H = params["w_out"].shape[1]
    Hp = _round_up(H, 128)
    Bp = _round_up(B, 8)

    # Embedding lookup, produced directly time-major and bf16 (no extra f32
    # materialization / HBM transpose pass before the kernel).
    idx = (seq + labels * n_skills)[:, :T].T                  # (T, B) int32
    emb_bf = params["emb"].astype(jnp.bfloat16)
    x = jnp.take(emb_bf, idx, axis=0)                          # (T, B, E) bf16
    if Bp != B:
        x = jnp.pad(x, ((0, 0), (0, Bp - B), (0, 0)))

    # Output-head gather: only the needed W_out rows / bias entries (O(N*H)),
    # H zero-padded to Hp, laid out time-major so they ride the LSTM tiles.
    target = seq[:, 1:]                                        # (B, T)
    w_out_p = jnp.pad(params["w_out"], ((0, 0), (0, Hp - H))).astype(jnp.bfloat16)
    w_tgt = jnp.transpose(jnp.take(w_out_p, target, axis=0), (1, 0, 2))  # (T,B,Hp)
    b_tgt = jnp.take(params["b_out"], target, axis=0).astype(jnp.float32).T  # (T,B)
    if Bp != B:
        w_tgt = jnp.pad(w_tgt, ((0, 0), (0, Bp - B), (0, 0)))
        b_tgt = jnp.pad(b_tgt, ((0, 0), (0, Bp - B)))
    b_tgt = b_tgt[..., None]                                   # (T, Bp, 1)

    layers = params["lstm"]
    # TODO(synk): fuse multi-layer LSTMs into a single pallas_call keeping the
    # inter-layer activations in VMEM; for now only the last layer fuses the
    # output head and earlier layers chain through bf16 HBM activations.
    for layer in layers[:-1]:
        x = lstm_layer(x, layer, Hp)                           # (T, Bp, Hp) bf16

    pred = lstm_layer(x, layers[-1], Hp, head=(w_tgt, b_tgt))  # (T, Bp, 1) f32
    return jnp.transpose(pred[:, :B, 0])                       # (B, T)


def init_params(key, n_skills, emb_size, hidden_size, num_layer):
    """Deterministic synthetic init (PyTorch-style uniform ranges)."""
    keys = jax.random.split(key, 3 + 4 * num_layer)
    k_emb, k_wo, k_bo = keys[0], keys[1], keys[2]
    params = {
        "emb": jax.random.normal(k_emb, (n_skills * 3, emb_size), jnp.float32),
        "w_out": jax.random.uniform(
            k_wo, (n_skills, hidden_size), jnp.float32,
            -1.0 / jnp.sqrt(hidden_size), 1.0 / jnp.sqrt(hidden_size)),
        "b_out": jax.random.uniform(
            k_bo, (n_skills,), jnp.float32,
            -1.0 / jnp.sqrt(hidden_size), 1.0 / jnp.sqrt(hidden_size)),
        "lstm": [],
    }
    k = 1.0 / jnp.sqrt(hidden_size)
    for l in range(num_layer):
        in_size = emb_size if l == 0 else hidden_size
        kw1, kw2, kb1, kb2 = keys[3 + 4 * l: 3 + 4 * (l + 1)]
        params["lstm"].append({
            "w_ih": jax.random.uniform(kw1, (4 * hidden_size, in_size),
                                       jnp.float32, -k, k),
            "w_hh": jax.random.uniform(kw2, (4 * hidden_size, hidden_size),
                                       jnp.float32, -k, k),
            "b_ih": jax.random.uniform(kb1, (4 * hidden_size,),
                                       jnp.float32, -k, k),
            "b_hh": jax.random.uniform(kb2, (4 * hidden_size,),
                                       jnp.float32, -k, k),
        })
    return params


if __name__ == "__main__":
    n_skills, emb_size, hidden_size, num_layer = 16, 32, 32, 1
    B, L = 2, 8

    key = jax.random.PRNGKey(0)
    k_params, k_seq, k_lab = jax.random.split(key, 3)

    params = init_params(k_params, n_skills, emb_size, hidden_size, num_layer)

    seq = jax.random.randint(k_seq, (B, L), 0, n_skills, jnp.int32)
    labels = jax.random.randint(k_lab, (B, L), 0, 2, jnp.int32)
    # input_array: (B, 3, L); row 1 (timestamps/other) is unused by forward.
    input_array = jnp.stack([seq, jnp.zeros_like(seq), labels], axis=1)

    prediction = dkt_forward(params, input_array, n_skills=n_skills)
    jax.block_until_ready(prediction)

    assert prediction.shape == (B, L - 1)
    assert bool(jnp.all((prediction >= 0.0) & (prediction <= 1.0)))
    print("KERNEL_OK")
</pallas_src>

<mosaic_0001>
module attributes {stable_mosaic.version = 11 : i64} {
  func.func @_lstm_head_kernel(%arg0: i32, %arg1: memref<7x8x32xbf16, #tpu.memory_space<vmem>>, %arg2: memref<32x512xbf16, #tpu.memory_space<vmem>>, %arg3: memref<128x512xbf16, #tpu.memory_space<vmem>>, %arg4: memref<1x512xf32, #tpu.memory_space<vmem>>, %arg5: memref<7x8x128xbf16, #tpu.memory_space<vmem>>, %arg6: memref<7x8x1xf32, #tpu.memory_space<vmem>>, %arg7: memref<7x8x1xf32, #tpu.memory_space<vmem>>, %arg8: memref<56x512xbf16, #tpu.memory_space<vmem>>, %arg9: memref<7x8x128xbf16, #tpu.memory_space<vmem>>) attributes {dimension_semantics = [#tpu.dimension_semantics<parallel>], iteration_bounds = array<i64: 1>, scalar_prefetch = 0 : i64, scratch_operands = 2 : i64, tpu.core_type = #tpu.core_type<tc>, window_params = [{transform_indices = @transform_0, window_bounds = array<i64: 7, 8, 32>}, {pipeline_mode = #tpu.pipeline_mode<synchronous>, transform_indices = @transform_1, window_bounds = array<i64: 32, 512>}, {pipeline_mode = #tpu.pipeline_mode<synchronous>, transform_indices = @transform_2, window_bounds = array<i64: 128, 512>}, {pipeline_mode = #tpu.pipeline_mode<synchronous>, transform_indices = @transform_3, window_bounds = array<i64: 1, 512>}, {transform_indices = @transform_4, window_bounds = array<i64: 7, 8, 128>}, {transform_indices = @transform_5, window_bounds = array<i64: 7, 8, 1>}, {transform_indices = @transform_6, window_bounds = array<i64: 7, 8, 1>}]} {
    %c0 = arith.constant 0 : index
    %c0_0 = arith.constant 0 : index
    %c0_1 = arith.constant 0 : index
    %0 = vector.load %arg1[%c0, %c0_0, %c0_1] : memref<7x8x32xbf16, #tpu.memory_space<vmem>>, vector<7x8x32xbf16>
    %1 = vector.shape_cast %0 : vector<7x8x32xbf16> to vector<56x32xbf16>
    %c0_2 = arith.constant 0 : index
    %c0_3 = arith.constant 0 : index
    %2 = vector.load %arg2[%c0_2, %c0_3] : memref<32x512xbf16, #tpu.memory_space<vmem>>, vector<32x512xbf16>
    %cst = arith.constant dense<0.000000e+00> : vector<56x512xf32>
    %3 = tpu.matmul %1, %2, %cst {dimension_numbers = #tpu.dot_dimension_numbers<[1], [0], [0], [1], [0, 0, 1, 1], [], []>} : vector<56x32xbf16>, vector<32x512xbf16>, vector<56x512xf32> -> vector<56x512xf32>
    %c0_4 = arith.constant 0 : index
    %c0_5 = arith.constant 0 : index
    %4 = vector.load %arg4[%c0_4, %c0_5] : memref<1x512xf32, #tpu.memory_space<vmem>>, vector<1x512xf32>
    %5 = vector.broadcast %4 : vector<1x512xf32> to vector<56x512xf32>
    %6 = arith.addf %3, %5 : vector<56x512xf32>
    %7 = arith.truncf %6 : vector<56x512xf32> to vector<56x512xbf16>
    %c0_6 = arith.constant 0 : index
    %c0_7 = arith.constant 0 : index
    %8 = vector.load %arg8[%c0_6, %c0_7] : memref<56x512xbf16, #tpu.memory_space<vmem>>, vector<56x512xbf16>
    tpu.vector_store %arg8[%c0_6, %c0_7], %7 {strides = array<i32>} : memref<56x512xbf16, #tpu.memory_space<vmem>>, vector<56x512xbf16>,
    %c0_8 = arith.constant 0 : index
    %c0_9 = arith.constant 0 : index
    %9 = vector.load %arg3[%c0_8, %c0_9] : memref<128x512xbf16, #tpu.memory_space<vmem>>, vector<128x512xbf16>
    %cst_10 = arith.constant 0.000000e+00 : bf16
    %10 = vector.broadcast %cst_10 : bf16 to vector<8x128xbf16>
    %cst_11 = arith.constant 0.000000e+00 : f32
    %11 = vector.broadcast %cst_11 : f32 to vector<8x128xf32>
    %c0_i32 = arith.constant 0 : i32
    %c8_i32 = arith.constant 8 : i32
    %12 = arith.muli %c0_i32, %c8_i32 : i32
    %13 = tpu.assume_multiple %12, 8 : i32
    %14 = arith.index_cast %13 : i32 to index
    %c0_12 = arith.constant 0 : index
    %15 = vector.load %arg8[%14, %c0_12] : memref<56x512xbf16, #tpu.memory_space<vmem>>, vector<8x512xbf16>
    %cst_13 = arith.constant dense<0.000000e+00> : vector<8x512xf32>
    %16 = tpu.matmul %10, %9, %cst_13 {dimension_numbers = #tpu.dot_dimension_numbers<[1], [0], [0], [1], [0, 0, 1, 1], [], []>} : vector<8x128xbf16>, vector<128x512xbf16>, vector<8x512xf32> -> vector<8x512xf32>
    %17 = arith.extf %15 : vector<8x512xbf16> to vector<8x512xf32>
    %18 = arith.addf %17, %16 : vector<8x512xf32>
    %19 = vector.extract_strided_slice %18 {offsets = [0, 0], sizes = [8, 128], strides = [1, 1]} : vector<8x512xf32> to vector<8x128xf32>
    %20 = arith.negf %19 : vector<8x128xf32>
    %21 = math.exp %20 : vector<8x128xf32>
    %cst_14 = arith.constant 1.000000e+00 : f32
    %22 = vector.broadcast %cst_14 : f32 to vector<8x128xf32>
    %23 = arith.addf %22, %21 : vector<8x128xf32>
    %24 = arith.divf %22, %23 : vector<8x128xf32>
    %25 = vector.extract_strided_slice %18 {offsets = [0, 128], sizes = [8, 128], strides = [1, 1]} : vector<8x512xf32> to vector<8x128xf32>
    %26 = arith.negf %25 : vector<8x128xf32>
    %27 = math.exp %26 : vector<8x128xf32>
    %cst_15 = arith.constant 1.000000e+00 : f32
    %28 = vector.broadcast %cst_15 : f32 to vector<8x128xf32>
    %29 = arith.addf %28, %27 : vector<8x128xf32>
    %30 = arith.divf %28, %29 : vector<8x128xf32>
    %31 = vector.extract_strided_slice %18 {offsets = [0, 256], sizes = [8, 128], strides = [1, 1]} : vector<8x512xf32> to vector<8x128xf32>
    %32 = math.tanh %31 : vector<8x128xf32>
    %33 = vector.extract_strided_slice %18 {offsets = [0, 384], sizes = [8, 128], strides = [1, 1]} : vector<8x512xf32> to vector<8x128xf32>
    %34 = arith.negf %33 : vector<8x128xf32>
    %35 = math.exp %34 : vector<8x128xf32>
    %cst_16 = arith.constant 1.000000e+00 : f32
    %36 = vector.broadcast %cst_16 : f32 to vector<8x128xf32>
    %37 = arith.addf %36, %35 : vector<8x128xf32>
    %38 = arith.divf %36, %37 : vector<8x128xf32>
    %39 = arith.mulf %30, %11 : vector<8x128xf32>
    %40 = arith.mulf %24, %32 : vector<8x128xf32>
    %41 = arith.addf %39, %40 : vector<8x128xf32>
    %42 = math.tanh %41 : vector<8x128xf32>
    %43 = arith.mulf %38, %42 : vector<8x128xf32>
    %44 = arith.truncf %43 : vector<8x128xf32> to vector<8x128xbf16>
    %45 = arith.index_cast %c0_i32 : i32 to index
    %c0_17 = arith.constant 0 : index
    %c0_18 = arith.constant 0 : index
    %46 = vector.load %arg9[%45, %c0_17, %c0_18] : memref<7x8x128xbf16, #tpu.memory_space<vmem>>, vector<1x8x128xbf16>
    %47 = vector.shape_cast %46 : vector<1x8x128xbf16> to vector<8x128xbf16>
    %48 = vector.shape_cast %44 : vector<8x128xbf16> to vector<1x8x128xbf16>
    tpu.vector_store %arg9[%45, %c0_17, %c0_18], %48 {strides = array<i32>} : memref<7x8x128xbf16, #tpu.memory_space<vmem>>, vector<1x8x128xbf16>,
    %c1_i32 = arith.constant 1 : i32
    %c8_i32_19 = arith.constant 8 : i32
    %49 = arith.muli %c1_i32, %c8_i32_19 : i32
    %50 = tpu.assume_multiple %49, 8 : i32
    %51 = arith.index_cast %50 : i32 to index
    %c0_20 = arith.constant 0 : index
    %52 = vector.load %arg8[%51, %c0_20] : memref<56x512xbf16, #tpu.memory_space<vmem>>, vector<8x512xbf16>
    %cst_21 = arith.constant dense<0.000000e+00> : vector<8x512xf32>
    %53 = tpu.matmul %44, %9, %cst_21 {dimension_numbers = #tpu.dot_dimension_numbers<[1], [0], [0], [1], [0, 0, 1, 1], [], []>} : vector<8x128xbf16>, vector<128x512xbf16>, vector<8x512xf32> -> vector<8x512xf32>
    %54 = arith.extf %52 : vector<8x512xbf16> to vector<8x512xf32>
    %55 = arith.addf %54, %53 : vector<8x512xf32>
    %56 = vector.extract_strided_slice %55 {offsets = [0, 0], sizes = [8, 128], strides = [1, 1]} : vector<8x512xf32> to vector<8x128xf32>
    %57 = arith.negf %56 : vector<8x128xf32>
    %58 = math.exp %57 : vector<8x128xf32>
    %cst_22 = arith.constant 1.000000e+00 : f32
    %59 = vector.broadcast %cst_22 : f32 to vector<8x128xf32>
    %60 = arith.addf %59, %58 : vector<8x128xf32>
    %61 = arith.divf %59, %60 : vector<8x128xf32>
    %62 = vector.extract_strided_slice %55 {offsets = [0, 128], sizes = [8, 128], strides = [1, 1]} : vector<8x512xf32> to vector<8x128xf32>
    %63 = arith.negf %62 : vector<8x128xf32>
    %64 = math.exp %63 : vector<8x128xf32>
    %cst_23 = arith.constant 1.000000e+00 : f32
    %65 = vector.broadcast %cst_23 : f32 to vector<8x128xf32>
    %66 = arith.addf %65, %64 : vector<8x128xf32>
    %67 = arith.divf %65, %66 : vector<8x128xf32>
    %68 = vector.extract_strided_slice %55 {offsets = [0, 256], sizes = [8, 128], strides = [1, 1]} : vector<8x512xf32> to vector<8x128xf32>
    %69 = math.tanh %68 : vector<8x128xf32>
    %70 = vector.extract_strided_slice %55 {offsets = [0, 384], sizes = [8, 128], strides = [1, 1]} : vector<8x512xf32> to vector<8x128xf32>
    %71 = arith.negf %70 : vector<8x128xf32>
    %72 = math.exp %71 : vector<8x128xf32>
    %cst_24 = arith.constant 1.000000e+00 : f32
    %73 = vector.broadcast %cst_24 : f32 to vector<8x128xf32>
    %74 = arith.addf %73, %72 : vector<8x128xf32>
    %75 = arith.divf %73, %74 : vector<8x128xf32>
    %76 = arith.mulf %67, %41 : vector<8x128xf32>
    %77 = arith.mulf %61, %69 : vector<8x128xf32>
    %78 = arith.addf %76, %77 : vector<8x128xf32>
    %79 = math.tanh %78 : vector<8x128xf32>
    %80 = arith.mulf %75, %79 : vector<8x128xf32>
    %81 = arith.truncf %80 : vector<8x128xf32> to vector<8x128xbf16>
    %82 = arith.index_cast %c1_i32 : i32 to index
    %c0_25 = arith.constant 0 : index
    %c0_26 = arith.constant 0 : index
    %83 = vector.load %arg9[%82, %c0_25, %c0_26] : memref<7x8x128xbf16, #tpu.memory_space<vmem>>, vector<1x8x128xbf16>
    %84 = vector.shape_cast %83 : vector<1x8x128xbf16> to vector<8x128xbf16>
    %85 = vector.shape_cast %81 : vector<8x128xbf16> to vector<1x8x128xbf16>
    tpu.vector_store %arg9[%82, %c0_25, %c0_26], %85 {strides = array<i32>} : memref<7x8x128xbf16, #tpu.memory_space<vmem>>, vector<1x8x128xbf16>,
    %c2_i32 = arith.constant 2 : i32
    %c8_i32_27 = arith.constant 8 : i32
    %86 = arith.muli %c2_i32, %c8_i32_27 : i32
    %87 = tpu.assume_multiple %86, 8 : i32
    %88 = arith.index_cast %87 : i32 to index
    %c0_28 = arith.constant 0 : index
    %89 = vector.load %arg8[%88, %c0_28] : memref<56x512xbf16, #tpu.memory_space<vmem>>, vector<8x512xbf16>
    %cst_29 = arith.constant dense<0.000000e+00> : vector<8x512xf32>
    %90 = tpu.matmul %81, %9, %cst_29 {dimension_numbers = #tpu.dot_dimension_numbers<[1], [0], [0], [1], [0, 0, 1, 1], [], []>} : vector<8x128xbf16>, vector<128x512xbf16>, vector<8x512xf32> -> vector<8x512xf32>
    %91 = arith.extf %89 : vector<8x512xbf16> to vector<8x512xf32>
    %92 = arith.addf %91, %90 : vector<8x512xf32>
    %93 = vector.extract_strided_slice %92 {offsets = [0, 0], sizes = [8, 128], strides = [1, 1]} : vector<8x512xf32> to vector<8x128xf32>
    %94 = arith.negf %93 : vector<8x128xf32>
    %95 = math.exp %94 : vector<8x128xf32>
    %cst_30 = arith.constant 1.000000e+00 : f32
    %96 = vector.broadcast %cst_30 : f32 to vector<8x128xf32>
    %97 = arith.addf %96, %95 : vector<8x128xf32>
    %98 = arith.divf %96, %97 : vector<8x128xf32>
    %99 = vector.extract_strided_slice %92 {offsets = [0, 128], sizes = [8, 128], strides = [1, 1]} : vector<8x512xf32> to vector<8x128xf32>
    %100 = arith.negf %99 : vector<8x128xf32>
    %101 = math.exp %100 : vector<8x128xf32>
    %cst_31 = arith.constant 1.000000e+00 : f32
    %102 = vector.broadcast %cst_31 : f32 to vector<8x128xf32>
    %103 = arith.addf %102, %101 : vector<8x128xf32>
    %104 = arith.divf %102, %103 : vector<8x128xf32>
    %105 = vector.extract_strided_slice %92 {offsets = [0, 256], sizes = [8, 128], strides = [1, 1]} : vector<8x512xf32> to vector<8x128xf32>
    %106 = math.tanh %105 : vector<8x128xf32>
    %107 = vector.extract_strided_slice %92 {offsets = [0, 384], sizes = [8, 128], strides = [1, 1]} : vector<8x512xf32> to vector<8x128xf32>
    %108 = arith.negf %107 : vector<8x128xf32>
    %109 = math.exp %108 : vector<8x128xf32>
    %cst_32 = arith.constant 1.000000e+00 : f32
    %110 = vector.broadcast %cst_32 : f32 to vector<8x128xf32>
    %111 = arith.addf %110, %109 : vector<8x128xf32>
    %112 = arith.divf %110, %111 : vector<8x128xf32>
    %113 = arith.mulf %104, %78 : vector<8x128xf32>
    %114 = arith.mulf %98, %106 : vector<8x128xf32>
    %115 = arith.addf %113, %114 : vector<8x128xf32>
    %116 = math.tanh %115 : vector<8x128xf32>
    %117 = arith.mulf %112, %116 : vector<8x128xf32>
    %118 = arith.truncf %117 : vector<8x128xf32> to vector<8x128xbf16>
    %119 = arith.index_cast %c2_i32 : i32 to index
    %c0_33 = arith.constant 0 : index
    %c0_34 = arith.constant 0 : index
    %120 = vector.load %arg9[%119, %c0_33, %c0_34] : memref<7x8x128xbf16, #tpu.memory_space<vmem>>, vector<1x8x128xbf16>
    %121 = vector.shape_cast %120 : vector<1x8x128xbf16> to vector<8x128xbf16>
    %122 = vector.shape_cast %118 : vector<8x128xbf16> to vector<1x8x128xbf16>
    tpu.vector_store %arg9[%119, %c0_33, %c0_34], %122 {strides = array<i32>} : memref<7x8x128xbf16, #tpu.memory_space<vmem>>, vector<1x8x128xbf16>,
    %c3_i32 = arith.constant 3 : i32
    %c8_i32_35 = arith.constant 8 : i32
    %123 = arith.muli %c3_i32, %c8_i32_35 : i32
    %124 = tpu.assume_multiple %123, 8 : i32
    %125 = arith.index_cast %124 : i32 to index
    %c0_36 = arith.constant 0 : index
    %126 = vector.load %arg8[%125, %c0_36] : memref<56x512xbf16, #tpu.memory_space<vmem>>, vector<8x512xbf16>
    %cst_37 = arith.constant dense<0.000000e+00> : vector<8x512xf32>
    %127 = tpu.matmul %118, %9, %cst_37 {dimension_numbers = #tpu.dot_dimension_numbers<[1], [0], [0], [1], [0, 0, 1, 1], [], []>} : vector<8x128xbf16>, vector<128x512xbf16>, vector<8x512xf32> -> vector<8x512xf32>
    %128 = arith.extf %126 : vector<8x512xbf16> to vector<8x512xf32>
    %129 = arith.addf %128, %127 : vector<8x512xf32>
    %130 = vector.extract_strided_slice %129 {offsets = [0, 0], sizes = [8, 128], strides = [1, 1]} : vector<8x512xf32> to vector<8x128xf32>
    %131 = arith.negf %130 : vector<8x128xf32>
    %132 = math.exp %131 : vector<8x128xf32>
    %cst_38 = arith.constant 1.000000e+00 : f32
    %133 = vector.broadcast %cst_38 : f32 to vector<8x128xf32>
    %134 = arith.addf %133, %132 : vector<8x128xf32>
    %135 = arith.divf %133, %134 : vector<8x128xf32>
    %136 = vector.extract_strided_slice %129 {offsets = [0, 128], sizes = [8, 128], strides = [1, 1]} : vector<8x512xf32> to vector<8x128xf32>
    %137 = arith.negf %136 : vector<8x128xf32>
    %138 = math.exp %137 : vector<8x128xf32>
    %cst_39 = arith.constant 1.000000e+00 : f32
    %139 = vector.broadcast %cst_39 : f32 to vector<8x128xf32>
    %140 = arith.addf %139, %138 : vector<8x128xf32>
    %141 = arith.divf %139, %140 : vector<8x128xf32>
    %142 = vector.extract_strided_slice %129 {offsets = [0, 256], sizes = [8, 128], strides = [1, 1]} : vector<8x512xf32> to vector<8x128xf32>
    %143 = math.tanh %142 : vector<8x128xf32>
    %144 = vector.extract_strided_slice %129 {offsets = [0, 384], sizes = [8, 128], strides = [1, 1]} : vector<8x512xf32> to vector<8x128xf32>
    %145 = arith.negf %144 : vector<8x128xf32>
    %146 = math.exp %145 : vector<8x128xf32>
    %cst_40 = arith.constant 1.000000e+00 : f32
    %147 = vector.broadcast %cst_40 : f32 to vector<8x128xf32>
    %148 = arith.addf %147, %146 : vector<8x128xf32>
    %149 = arith.divf %147, %148 : vector<8x128xf32>
    %150 = arith.mulf %141, %115 : vector<8x128xf32>
    %151 = arith.mulf %135, %143 : vector<8x128xf32>
    %152 = arith.addf %150, %151 : vector<8x128xf32>
    %153 = math.tanh %152 : vector<8x128xf32>
    %154 = arith.mulf %149, %153 : vector<8x128xf32>
    %155 = arith.truncf %154 : vector<8x128xf32> to vector<8x128xbf16>
    %156 = arith.index_cast %c3_i32 : i32 to index
    %c0_41 = arith.constant 0 : index
    %c0_42 = arith.constant 0 : index
    %157 = vector.load %arg9[%156, %c0_41, %c0_42] : memref<7x8x128xbf16, #tpu.memory_space<vmem>>, vector<1x8x128xbf16>
    %158 = vector.shape_cast %157 : vector<1x8x128xbf16> to vector<8x128xbf16>
    %159 = vector.shape_cast %155 : vector<8x128xbf16> to vector<1x8x128xbf16>
    tpu.vector_store %arg9[%156, %c0_41, %c0_42], %159 {strides = array<i32>} : memref<7x8x128xbf16, #tpu.memory_space<vmem>>, vector<1x8x128xbf16>,
    %c4_i32 = arith.constant 4 : i32
    %c8_i32_43 = arith.constant 8 : i32
    %160 = arith.muli %c4_i32, %c8_i32_43 : i32
    %161 = tpu.assume_multiple %160, 8 : i32
    %162 = arith.index_cast %161 : i32 to index
    %c0_44 = arith.constant 0 : index
    %163 = vector.load %arg8[%162, %c0_44] : memref<56x512xbf16, #tpu.memory_space<vmem>>, vector<8x512xbf16>
    %cst_45 = arith.constant dense<0.000000e+00> : vector<8x512xf32>
    %164 = tpu.matmul %155, %9, %cst_45 {dimension_numbers = #tpu.dot_dimension_numbers<[1], [0], [0], [1], [0, 0, 1, 1], [], []>} : vector<8x128xbf16>, vector<128x512xbf16>, vector<8x512xf32> -> vector<8x512xf32>
    %165 = arith.extf %163 : vector<8x512xbf16> to vector<8x512xf32>
    %166 = arith.addf %165, %164 : vector<8x512xf32>
    %167 = vector.extract_strided_slice %166 {offsets = [0, 0], sizes = [8, 128], strides = [1, 1]} : vector<8x512xf32> to vector<8x128xf32>
    %168 = arith.negf %167 : vector<8x128xf32>
    %169 = math.exp %168 : vector<8x128xf32>
    %cst_46 = arith.constant 1.000000e+00 : f32
    %170 = vector.broadcast %cst_46 : f32 to vector<8x128xf32>
    %171 = arith.addf %170, %169 : vector<8x128xf32>
    %172 = arith.divf %170, %171 : vector<8x128xf32>
    %173 = vector.extract_strided_slice %166 {offsets = [0, 128], sizes = [8, 128], strides = [1, 1]} : vector<8x512xf32> to vector<8x128xf32>
    %174 = arith.negf %173 : vector<8x128xf32>
    %175 = math.exp %174 : vector<8x128xf32>
    %cst_47 = arith.constant 1.000000e+00 : f32
    %176 = vector.broadcast %cst_47 : f32 to vector<8x128xf32>
    %177 = arith.addf %176, %175 : vector<8x128xf32>
    %178 = arith.divf %176, %177 : vector<8x128xf32>
    %179 = vector.extract_strided_slice %166 {offsets = [0, 256], sizes = [8, 128], strides = [1, 1]} : vector<8x512xf32> to vector<8x128xf32>
    %180 = math.tanh %179 : vector<8x128xf32>
    %181 = vector.extract_strided_slice %166 {offsets = [0, 384], sizes = [8, 128], strides = [1, 1]} : vector<8x512xf32> to vector<8x128xf32>
    %182 = arith.negf %181 : vector<8x128xf32>
    %183 = math.exp %182 : vector<8x128xf32>
    %cst_48 = arith.constant 1.000000e+00 : f32
    %184 = vector.broadcast %cst_48 : f32 to vector<8x128xf32>
    %185 = arith.addf %184, %183 : vector<8x128xf32>
    %186 = arith.divf %184, %185 : vector<8x128xf32>
    %187 = arith.mulf %178, %152 : vector<8x128xf32>
    %188 = arith.mulf %172, %180 : vector<8x128xf32>
    %189 = arith.addf %187, %188 : vector<8x128xf32>
    %190 = math.tanh %189 : vector<8x128xf32>
    %191 = arith.mulf %186, %190 : vector<8x128xf32>
    %192 = arith.truncf %191 : vector<8x128xf32> to vector<8x128xbf16>
    %193 = arith.index_cast %c4_i32 : i32 to index
    %c0_49 = arith.constant 0 : index
    %c0_50 = arith.constant 0 : index
    %194 = vector.load %arg9[%193, %c0_49, %c0_50] : memref<7x8x128xbf16, #tpu.memory_space<vmem>>, vector<1x8x128xbf16>
    %195 = vector.shape_cast %194 : vector<1x8x128xbf16> to vector<8x128xbf16>
    %196 = vector.shape_cast %192 : vector<8x128xbf16> to vector<1x8x128xbf16>
    tpu.vector_store %arg9[%193, %c0_49, %c0_50], %196 {strides = array<i32>} : memref<7x8x128xbf16, #tpu.memory_space<vmem>>, vector<1x8x128xbf16>,
    %c5_i32 = arith.constant 5 : i32
    %c8_i32_51 = arith.constant 8 : i32
    %197 = arith.muli %c5_i32, %c8_i32_51 : i32
    %198 = tpu.assume_multiple %197, 8 : i32
    %199 = arith.index_cast %198 : i32 to index
    %c0_52 = arith.constant 0 : index
    %200 = vector.load %arg8[%199, %c0_52] : memref<56x512xbf16, #tpu.memory_space<vmem>>, vector<8x512xbf16>
    %cst_53 = arith.constant dense<0.000000e+00> : vector<8x512xf32>
    %201 = tpu.matmul %192, %9, %cst_53 {dimension_numbers = #tpu.dot_dimension_numbers<[1], [0], [0], [1], [0, 0, 1, 1], [], []>} : vector<8x128xbf16>, vector<128x512xbf16>, vector<8x512xf32> -> vector<8x512xf32>
    %202 = arith.extf %200 : vector<8x512xbf16> to vector<8x512xf32>
    %203 = arith.addf %202, %201 : vector<8x512xf32>
    %204 = vector.extract_strided_slice %203 {offsets = [0, 0], sizes = [8, 128], strides = [1, 1]} : vector<8x512xf32> to vector<8x128xf32>
    %205 = arith.negf %204 : vector<8x128xf32>
    %206 = math.exp %205 : vector<8x128xf32>
    %cst_54 = arith.constant 1.000000e+00 : f32
    %207 = vector.broadcast %cst_54 : f32 to vector<8x128xf32>
    %208 = arith.addf %207, %206 : vector<8x128xf32>
    %209 = arith.divf %207, %208 : vector<8x128xf32>
    %210 = vector.extract_strided_slice %203 {offsets = [0, 128], sizes = [8, 128], strides = [1, 1]} : vector<8x512xf32> to vector<8x128xf32>
    %211 = arith.negf %210 : vector<8x128xf32>
    %212 = math.exp %211 : vector<8x128xf32>
    %cst_55 = arith.constant 1.000000e+00 : f32
    %213 = vector.broadcast %cst_55 : f32 to vector<8x128xf32>
    %214 = arith.addf %213, %212 : vector<8x128xf32>
    %215 = arith.divf %213, %214 : vector<8x128xf32>
    %216 = vector.extract_strided_slice %203 {offsets = [0, 256], sizes = [8, 128], strides = [1, 1]} : vector<8x512xf32> to vector<8x128xf32>
    %217 = math.tanh %216 : vector<8x128xf32>
    %218 = vector.extract_strided_slice %203 {offsets = [0, 384], sizes = [8, 128], strides = [1, 1]} : vector<8x512xf32> to vector<8x128xf32>
    %219 = arith.negf %218 : vector<8x128xf32>
    %220 = math.exp %219 : vector<8x128xf32>
    %cst_56 = arith.constant 1.000000e+00 : f32
    %221 = vector.broadcast %cst_56 : f32 to vector<8x128xf32>
    %222 = arith.addf %221, %220 : vector<8x128xf32>
    %223 = arith.divf %221, %222 : vector<8x128xf32>
    %224 = arith.mulf %215, %189 : vector<8x128xf32>
    %225 = arith.mulf %209, %217 : vector<8x128xf32>
    %226 = arith.addf %224, %225 : vector<8x128xf32>
    %227 = math.tanh %226 : vector<8x128xf32>
    %228 = arith.mulf %223, %227 : vector<8x128xf32>
    %229 = arith.truncf %228 : vector<8x128xf32> to vector<8x128xbf16>
    %230 = arith.index_cast %c5_i32 : i32 to index
    %c0_57 = arith.constant 0 : index
    %c0_58 = arith.constant 0 : index
    %231 = vector.load %arg9[%230, %c0_57, %c0_58] : memref<7x8x128xbf16, #tpu.memory_space<vmem>>, vector<1x8x128xbf16>
    %232 = vector.shape_cast %231 : vector<1x8x128xbf16> to vector<8x128xbf16>
    %233 = vector.shape_cast %229 : vector<8x128xbf16> to vector<1x8x128xbf16>
    tpu.vector_store %arg9[%230, %c0_57, %c0_58], %233 {strides = array<i32>} : memref<7x8x128xbf16, #tpu.memory_space<vmem>>, vector<1x8x128xbf16>,
    %c6_i32 = arith.constant 6 : i32
    %c8_i32_59 = arith.constant 8 : i32
    %234 = arith.muli %c6_i32, %c8_i32_59 : i32
    %235 = tpu.assume_multiple %234, 8 : i32
    %236 = arith.index_cast %235 : i32 to index
    %c0_60 = arith.constant 0 : index
    %237 = vector.load %arg8[%236, %c0_60] : memref<56x512xbf16, #tpu.memory_space<vmem>>, vector<8x512xbf16>
    %cst_61 = arith.constant dense<0.000000e+00> : vector<8x512xf32>
    %238 = tpu.matmul %229, %9, %cst_61 {dimension_numbers = #tpu.dot_dimension_numbers<[1], [0], [0], [1], [0, 0, 1, 1], [], []>} : vector<8x128xbf16>, vector<128x512xbf16>, vector<8x512xf32> -> vector<8x512xf32>
    %239 = arith.extf %237 : vector<8x512xbf16> to vector<8x512xf32>
    %240 = arith.addf %239, %238 : vector<8x512xf32>
    %241 = vector.extract_strided_slice %240 {offsets = [0, 0], sizes = [8, 128], strides = [1, 1]} : vector<8x512xf32> to vector<8x128xf32>
    %242 = arith.negf %241 : vector<8x128xf32>
    %243 = math.exp %242 : vector<8x128xf32>
    %cst_62 = arith.constant 1.000000e+00 : f32
    %244 = vector.broadcast %cst_62 : f32 to vector<8x128xf32>
    %245 = arith.addf %244, %243 : vector<8x128xf32>
    %246 = arith.divf %244, %245 : vector<8x128xf32>
    %247 = vector.extract_strided_slice %240 {offsets = [0, 128], sizes = [8, 128], strides = [1, 1]} : vector<8x512xf32> to vector<8x128xf32>
    %248 = arith.negf %247 : vector<8x128xf32>
    %249 = math.exp %248 : vector<8x128xf32>
    %cst_63 = arith.constant 1.000000e+00 : f32
    %250 = vector.broadcast %cst_63 : f32 to vector<8x128xf32>
    %251 = arith.addf %250, %249 : vector<8x128xf32>
    %252 = arith.divf %250, %251 : vector<8x128xf32>
    %253 = vector.extract_strided_slice %240 {offsets = [0, 256], sizes = [8, 128], strides = [1, 1]} : vector<8x512xf32> to vector<8x128xf32>
    %254 = math.tanh %253 : vector<8x128xf32>
    %255 = vector.extract_strided_slice %240 {offsets = [0, 384], sizes = [8, 128], strides = [1, 1]} : vector<8x512xf32> to vector<8x128xf32>
    %256 = arith.negf %255 : vector<8x128xf32>
    %257 = math.exp %256 : vector<8x128xf32>
    %cst_64 = arith.constant 1.000000e+00 : f32
    %258 = vector.broadcast %cst_64 : f32 to vector<8x128xf32>
    %259 = arith.addf %258, %257 : vector<8x128xf32>
    %260 = arith.divf %258, %259 : vector<8x128xf32>
    %261 = arith.mulf %252, %226 : vector<8x128xf32>
    %262 = arith.mulf %246, %254 : vector<8x128xf32>
    %263 = arith.addf %261, %262 : vector<8x128xf32>
    %264 = math.tanh %263 : vector<8x128xf32>
    %265 = arith.mulf %260, %264 : vector<8x128xf32>
    %266 = arith.truncf %265 : vector<8x128xf32> to vector<8x128xbf16>
    %267 = arith.index_cast %c6_i32 : i32 to index
    %c0_65 = arith.constant 0 : index
    %c0_66 = arith.constant 0 : index
    %268 = vector.load %arg9[%267, %c0_65, %c0_66] : memref<7x8x128xbf16, #tpu.memory_space<vmem>>, vector<1x8x128xbf16>
    %269 = vector.shape_cast %268 : vector<1x8x128xbf16> to vector<8x128xbf16>
    %270 = vector.shape_cast %266 : vector<8x128xbf16> to vector<1x8x128xbf16>
    tpu.vector_store %arg9[%267, %c0_65, %c0_66], %270 {strides = array<i32>} : memref<7x8x128xbf16, #tpu.memory_space<vmem>>, vector<1x8x128xbf16>,
    %c7_i32 = arith.constant 7 : i32
    %c0_67 = arith.constant 0 : index
    %c0_68 = arith.constant 0 : index
    %c0_69 = arith.constant 0 : index
    %271 = vector.load %arg9[%c0_67, %c0_68, %c0_69] : memref<7x8x128xbf16, #tpu.memory_space<vmem>>, vector<7x8x128xbf16>
    %272 = arith.extf %271 : vector<7x8x128xbf16> to vector<7x8x128xf32>
    %c0_70 = arith.constant 0 : index
    %c0_71 = arith.constant 0 : index
    %c0_72 = arith.constant 0 : index
    %273 = vector.load %arg5[%c0_70, %c0_71, %c0_72] : memref<7x8x128xbf16, #tpu.memory_space<vmem>>, vector<7x8x128xbf16>
    %274 = arith.extf %273 : vector<7x8x128xbf16> to vector<7x8x128xf32>
    %275 = arith.mulf %272, %274 : vector<7x8x128xf32>
    %cst_73 = arith.constant dense<0.000000e+00> : vector<7x8xf32>
    %276 = vector.multi_reduction <add>, %275, %cst_73 [2] : vector<7x8x128xf32> to vector<7x8xf32>
    %277 = vector.shape_cast %276 : vector<7x8xf32> to vector<7x8x1xf32>
    %c0_74 = arith.constant 0 : index
    %c0_75 = arith.constant 0 : index
    %c0_76 = arith.constant 0 : index
    %278 = vector.load %arg6[%c0_74, %c0_75, %c0_76] : memref<7x8x1xf32, #tpu.memory_space<vmem>>, vector<7x8x1xf32>
    %279 = arith.addf %277, %278 : vector<7x8x1xf32>
    %280 = arith.negf %279 : vector<7x8x1xf32>
    %281 = math.exp %280 : vector<7x8x1xf32>
    %cst_77 = arith.constant 1.000000e+00 : f32
    %282 = vector.broadcast %cst_77 : f32 to vector<7x8x1xf32>
    %283 = arith.addf %282, %281 : vector<7x8x1xf32>
    %284 = arith.divf %282, %283 : vector<7x8x1xf32>
    %c0_78 = arith.constant 0 : index
    %c0_79 = arith.constant 0 : index
    %c0_80 = arith.constant 0 : index
    %285 = vector.load %arg7[%c0_78, %c0_79, %c0_80] : memref<7x8x1xf32, #tpu.memory_space<vmem>>, vector<7x8x1xf32>
    tpu.vector_store %arg7[%c0_78, %c0_79, %c0_80], %284 {strides = array<i32>} : memref<7x8x1xf32, #tpu.memory_space<vmem>>, vector<7x8x1xf32>,
    return
  }
  func.func @transform_0(%arg0: i32) -> (i32, i32, i32) {
    %c0_i32 = arith.constant 0 : i32
    %c0_i32_0 = arith.constant 0 : i32
    %c0_i32_1 = arith.constant 0 : i32
    return %c0_i32, %arg0, %c0_i32_0 : i32, i32, i32
  }
  func.func @transform_1(%arg0: i32) -> (i32, i32) {
    %c0_i32 = arith.constant 0 : i32
    %c0_i32_0 = arith.constant 0 : i32
    %c0_i32_1 = arith.constant 0 : i32
    return %c0_i32, %c0_i32_0 : i32, i32
  }
  func.func @transform_2(%arg0: i32) -> (i32, i32) {
    %c0_i32 = arith.constant 0 : i32
    %c0_i32_0 = arith.constant 0 : i32
    %c0_i32_1 = arith.constant 0 : i32
    return %c0_i32, %c0_i32_0 : i32, i32
  }
  func.func @transform_3(%arg0: i32) -> (i32, i32) {
    %c0_i32 = arith.constant 0 : i32
    %c0_i32_0 = arith.constant 0 : i32
    %c0_i32_1 = arith.constant 0 : i32
    return %c0_i32, %c0_i32_0 : i32, i32
  }
  func.func @transform_4(%arg0: i32) -> (i32, i32, i32) {
    %c0_i32 = arith.constant 0 : i32
    %c0_i32_0 = arith.constant 0 : i32
    %c0_i32_1 = arith.constant 0 : i32
    return %c0_i32, %arg0, %c0_i32_0 : i32, i32, i32
  }
  func.func @transform_5(%arg0: i32) -> (i32, i32, i32) {
    %c0_i32 = arith.constant 0 : i32
    %c0_i32_0 = arith.constant 0 : i32
    %c0_i32_1 = arith.constant 0 : i32
    return %c0_i32, %arg0, %c0_i32_0 : i32, i32, i32
  }
  func.func @transform_6(%arg0: i32) -> (i32, i32, i32) {
    %c0_i32 = arith.constant 0 : i32
    %c0_i32_0 = arith.constant 0 : i32
    %c0_i32_1 = arith.constant 0 : i32
    return %c0_i32, %arg0, %c0_i32_0 : i32, i32, i32
  }
}

</mosaic_0001>

<llo_original>
// kernel: dkt_forward.1
$region0: #{dkt_forward.1}
  #allocation0 [shape = 'u32[]', space=smem, size = 0x4, offset = 0x4, fixed_abs, tag = 'smem constant byte address 0x4 - core index']
  #allocation1 [shape = 'u32[72,128]{1,0:T(1,128)}', space=vmem, size = 0x9000, scoped, tag = 'internal scratch']
  #allocation2 [shape = 'bf16[56,512]{1,0:T(8,128)(2,1)}', space=vmem, size = 0xe000, scoped, tag = 'scratch operand']
  #allocation3 [shape = 'bf16[7,8,128]{2,1,0:T(8,128)(2,1)}', space=vmem, size = 0x3800, scoped, tag = 'scratch operand']
  %s0 = inlined_call_operand.vmem [shape: bf16[7,8,32], index: 0, kind: input, shape index: {}]
  %s1 = inlined_call_operand.vmem [shape: bf16[32,512], index: 1, kind: input, shape index: {}]
  %s2 = inlined_call_operand.vmem [shape: bf16[128,512], index: 2, kind: input, shape index: {}]
  %s3 = inlined_call_operand.vmem [shape: f32[1,512], index: 3, kind: input, shape index: {}]
  %s4 = inlined_call_operand.vmem [shape: bf16[7,8,128], index: 4, kind: input, shape index: {}]
  %s5 = inlined_call_operand.vmem [shape: f32[7,8,1], index: 5, kind: input, shape index: {}]
  %s6 = inlined_call_operand.vmem [shape: f32[7,8,1], index: 6, kind: output, shape index: {}]
  %s7 = sld [smem:[#allocation0]]
  $region34: #{dkt_forward.1} parent=0
    _
  %s9 = ssub.s32 1, %s7
  %s10 = scalar_select 0, %s9, %s7
  // Predicated region
  $region2: #{dkt_forward.1} parent=0 // pred_check
    _
  $region3: #{dkt_forward.1} parent=0 // pred_check_branch
    %12 = sbr.rel (0) target = $region5
  $region4: #{dkt_forward.1} parent=0 // pred_region
    _
  $region5: #{dkt_forward.1} parent=0 // pred_fallthru
    _
  // Predicated region
  $region6: #{dkt_forward.1} parent=0 // pred_check
    _
  $region7: #{dkt_forward.1} parent=0 // pred_check_branch
    %14 = sbr.rel (0) target = $region9
  $region8: #{dkt_forward.1} parent=0 // pred_region
    _
  $region9: #{dkt_forward.1} parent=0 // pred_fallthru
    _
  // Predicated region
  $region10: #{dkt_forward.1} parent=0 // pred_check
    _
  $region11: #{dkt_forward.1} parent=0 // pred_check_branch
    %16 = sbr.rel (0) target = $region13
  $region12: #{dkt_forward.1} parent=0 // pred_region
    _
  $region13: #{dkt_forward.1} parent=0 // pred_fallthru
    _
  // Predicated region
  $region14: #{dkt_forward.1} parent=0 // pred_check
    _
  $region15: #{dkt_forward.1} parent=0 // pred_check_branch
    %18 = sbr.rel (0) target = $region17
  $region16: #{dkt_forward.1} parent=0 // pred_region
    _
  $region17: #{dkt_forward.1} parent=0 // pred_fallthru
    _
  // Predicated region
  $region18: #{dkt_forward.1} parent=0 // pred_check
    _
  $region19: #{dkt_forward.1} parent=0 // pred_check_branch
    %20 = sbr.rel (0) target = $region21
  $region20: #{dkt_forward.1} parent=0 // pred_region
    _
  $region21: #{dkt_forward.1} parent=0 // pred_fallthru
    _
  // Predicated region
  $region22: #{dkt_forward.1} parent=0 // pred_check
    _
  $region23: #{dkt_forward.1} parent=0 // pred_check_branch
    %22 = sbr.rel (0) target = $region25
  $region24: #{dkt_forward.1} parent=0 // pred_region
    _
  $region25: #{dkt_forward.1} parent=0 // pred_fallthru
    _
  %v24 = vld [vmem:[%s0] sm:$0xf]
  %v25 = vld [vmem:[%s0 + $0x4] sm:$0xf]
  %v26 = vld [vmem:[%s0 + $0x8] sm:$0xf]
  %v27 = vld [vmem:[%s0 + $0xc] sm:$0xf]
  %v28 = vld [vmem:[%s0 + $0x10] sm:$0xf]
  %v29 = vld [vmem:[%s0 + $0x14] sm:$0xf]
  %v30 = vld [vmem:[%s0 + $0x18] sm:$0xf]
  %v31 = vld [vmem:[%s1] sm:$0xff]
  %v32 = vld [vmem:[%s1 + $0x8] sm:$0xff]
  %v33 = vld [vmem:[%s1 + $0x10] sm:$0xff]
  %v34 = vld [vmem:[%s1 + $0x18] sm:$0xff]
  %v35 = vld [vmem:[%s1 + $0x20] sm:$0xff]
  %v36 = vld [vmem:[%s1 + $0x28] sm:$0xff]
  %v37 = vld [vmem:[%s1 + $0x30] sm:$0xff]
  %v38 = vld [vmem:[%s1 + $0x38] sm:$0xff]
  %v39 = vld [vmem:[%s3] sm:$0xf]
  %v41 = vperm.slane %v39, 0
  %v42 = vperm.slane %v39, 1
  %v43 = vperm.slane %v39, 2
  %v44 = vperm.slane %v39, 3
  %v56 = vunpack.c.l.b16 %v24
  %v57 = vunpack.c.l.b16 %v25
  %v58 = vunpack.c.l.b16 %v26
  %v59 = vunpack.c.l.b16 %v27
  %v60 = vunpack.c.l.b16 %v28
  %v61 = vunpack.c.l.b16 %v29
  %v62 = vunpack.c.l.b16 %v30
  %v63 = vpack.c.b16 %v57, %v56
  %v64 = vpack.c.b16 %v59, %v58
  %v65 = vpack.c.b16 %v61, %v60
  %v66 = vpack.c.b16 %v62, %v62
  %v75 = vunpack.c.l.b16 %v31
  %v76 = vunpack.c.h.b16 %v31
  %v77 = vunpack.c.l.b16 %v32
  %v78 = vunpack.c.h.b16 %v32
  %v79 = vunpack.c.l.b16 %v33
  %v80 = vunpack.c.h.b16 %v33
  %v81 = vunpack.c.l.b16 %v34
  %v82 = vunpack.c.h.b16 %v34
  %v83 = vunpack.c.l.b16 %v35
  %v84 = vunpack.c.h.b16 %v35
  %v85 = vunpack.c.l.b16 %v36
  %v86 = vunpack.c.h.b16 %v36
  %v87 = vunpack.c.l.b16 %v37
  %v88 = vunpack.c.h.b16 %v37
  %v89 = vunpack.c.l.b16 %v38
  %v90 = vunpack.c.h.b16 %v38
  %v91 = vpack.c.b16 %v79, %v75
  %v92 = vpack.c.b16 %v80, %v76
  %v93 = vpack.c.b16 %v81, %v77
  %v94 = vpack.c.b16 %v82, %v78
  %v95 = vpack.c.b16 %v87, %v83
  %v96 = vpack.c.b16 %v88, %v84
  %v97 = vpack.c.b16 %v89, %v85
  %v98 = vpack.c.b16 %v90, %v86
  %vm107 = vcmask 261120
  %v109 = vsel %vm107, %v63, 0
  %v112 = vsel %vm107, %v64, 0
  %v115 = vsel %vm107, %v65, 0
  %v118 = vsel %vm107, %v66, 0
  %120 = vmatpush.bf16.msra.mxu0 0
  %121 = vmatpush.bf16.msra.mxu0 0
  %122 = vmatpush.bf16.msra.mxu0 0
  %123 = vmatpush.bf16.msra.mxu0 0
  %124 = vmatpush.bf16.msra.mxu0 0
  %125 = vmatpush.bf16.msra.mxu0 0
  %126 = vmatpush.bf16.msra.mxu0 %v95
  %127 = vmatpush.bf16.msra.mxu0 %v91
  %128 = vmatmul.bf16.gmra.mxu0 %v109
  %v129 = vpop.f32.mrf.mxu0
  %v130 = vadd.f32 %v41, %v129
  %v131 = vpop.f32.mrf.mxu0
  %v132 = vadd.f32 %v41, %v131
  %133 = vmatmul.bf16.gmra.mxu0 %v112
  %v134 = vpop.f32.mrf.mxu0
  %v135 = vadd.f32 %v41, %v134
  %v136 = vpop.f32.mrf.mxu0
  %v137 = vadd.f32 %v41, %v136
  %138 = vmatmul.bf16.gmra.mxu0 %v115
  %v139 = vpop.f32.mrf.mxu0
  %v140 = vadd.f32 %v41, %v139
  %v141 = vpop.f32.mrf.mxu0
  %v142 = vadd.f32 %v41, %v141
  %143 = vmatmul.bf16.gmra.mxu0 %v118
  %v144 = vpop.f32.mrf.mxu0
  %v145 = vadd.f32 %v41, %v144
  %v146 = vpop.f32.mrf.mxu0
  %147 = vdwg.mxu0
  %148 = vmatpush.bf16.msra.mxu0 0
  %149 = vmatpush.bf16.msra.mxu0 0
  %150 = vmatpush.bf16.msra.mxu0 0
  %151 = vmatpush.bf16.msra.mxu0 0
  %152 = vmatpush.bf16.msra.mxu0 0
  %153 = vmatpush.bf16.msra.mxu0 0
  %154 = vmatpush.bf16.msra.mxu0 %v96
  %155 = vmatpush.bf16.msra.mxu0 %v92
  %156 = vmatmul.bf16.gmra.mxu0 %v109
  %v157 = vpop.f32.mrf.mxu0
  %v158 = vadd.f32 %v42, %v157
  %v159 = vpop.f32.mrf.mxu0
  %v160 = vadd.f32 %v42, %v159
  %161 = vmatmul.bf16.gmra.mxu0 %v112
  %v162 = vpop.f32.mrf.mxu0
  %v163 = vadd.f32 %v42, %v162
  %v164 = vpop.f32.mrf.mxu0
  %v165 = vadd.f32 %v42, %v164
  %166 = vmatmul.bf16.gmra.mxu0 %v115
  %v167 = vpop.f32.mrf.mxu0
  %v168 = vadd.f32 %v42, %v167
  %v169 = vpop.f32.mrf.mxu0
  %v170 = vadd.f32 %v42, %v169
  %171 = vmatmul.bf16.gmra.mxu0 %v118
  %v172 = vpop.f32.mrf.mxu0
  %v173 = vadd.f32 %v42, %v172
  %v174 = vpop.f32.mrf.mxu0
  %175 = vdwg.mxu0
  %176 = vmatpush.bf16.msra.mxu0 0
  %177 = vmatpush.bf16.msra.mxu0 0
  %178 = vmatpush.bf16.msra.mxu0 0
  %179 = vmatpush.bf16.msra.mxu0 0
  %180 = vmatpush.bf16.msra.mxu0 0
  %181 = vmatpush.bf16.msra.mxu0 0
  %182 = vmatpush.bf16.msra.mxu0 %v97
  %183 = vmatpush.bf16.msra.mxu0 %v93
  %184 = vmatmul.bf16.gmra.mxu0 %v109
  %v185 = vpop.f32.mrf.mxu0
  %v186 = vadd.f32 %v43, %v185
  %v187 = vpop.f32.mrf.mxu0
  %v188 = vadd.f32 %v43, %v187
  %189 = vmatmul.bf16.gmra.mxu0 %v112
  %v190 = vpop.f32.mrf.mxu0
  %v191 = vadd.f32 %v43, %v190
  %v192 = vpop.f32.mrf.mxu0
  %v193 = vadd.f32 %v43, %v192
  %194 = vmatmul.bf16.gmra.mxu0 %v115
  %v195 = vpop.f32.mrf.mxu0
  %v196 = vadd.f32 %v43, %v195
  %v197 = vpop.f32.mrf.mxu0
  %v198 = vadd.f32 %v43, %v197
  %199 = vmatmul.bf16.gmra.mxu0 %v118
  %v200 = vpop.f32.mrf.mxu0
  %v201 = vadd.f32 %v43, %v200
  %v202 = vpop.f32.mrf.mxu0
  %203 = vdwg.mxu0
  %204 = vmatpush.bf16.msra.mxu0 0
  %205 = vmatpush.bf16.msra.mxu0 0
  %206 = vmatpush.bf16.msra.mxu0 0
  %207 = vmatpush.bf16.msra.mxu0 0
  %208 = vmatpush.bf16.msra.mxu0 0
  %209 = vmatpush.bf16.msra.mxu0 0
  %210 = vmatpush.bf16.msra.mxu0 %v98
  %211 = vmatpush.bf16.msra.mxu0 %v94
  %212 = vmatmul.bf16.gmra.mxu0 %v109
  %v213 = vpop.f32.mrf.mxu0
  %v214 = vadd.f32 %v44, %v213
  %v215 = vpop.f32.mrf.mxu0
  %v216 = vadd.f32 %v44, %v215
  %217 = vmatmul.bf16.gmra.mxu0 %v112
  %v218 = vpop.f32.mrf.mxu0
  %v219 = vadd.f32 %v44, %v218
  %v220 = vpop.f32.mrf.mxu0
  %v221 = vadd.f32 %v44, %v220
  %222 = vmatmul.bf16.gmra.mxu0 %v115
  %v223 = vpop.f32.mrf.mxu0
  %v224 = vadd.f32 %v44, %v223
  %v225 = vpop.f32.mrf.mxu0
  %v226 = vadd.f32 %v44, %v225
  %227 = vmatmul.bf16.gmra.mxu0 %v118
  %v228 = vpop.f32.mrf.mxu0
  %v229 = vadd.f32 %v44, %v228
  %v230 = vpop.f32.mrf.mxu0
  %231 = vdwg.mxu0
  %v232 = vpack.c.bf16 %v158, %v130
  %v233 = vpack.c.bf16 %v214, %v186
  %v234 = vpack.c.bf16 %v160, %v132
  %v235 = vpack.c.bf16 %v216, %v188
  %v236 = vpack.c.bf16 %v163, %v135
  %v237 = vpack.c.bf16 %v219, %v191
  %v238 = vpack.c.bf16 %v165, %v137
  %v239 = vpack.c.bf16 %v221, %v193
  %v240 = vpack.c.bf16 %v168, %v140
  %v241 = vpack.c.bf16 %v224, %v196
  %v242 = vpack.c.bf16 %v170, %v142
  %v243 = vpack.c.bf16 %v226, %v198
  %v244 = vpack.c.bf16 %v173, %v145
  %v245 = vpack.c.bf16 %v229, %v201
  %246 = vst [vmem:[#allocation2] sm:$0xff] %v232
  %247 = vst [vmem:[#allocation2 + $0x8] sm:$0xff] %v233
  %248 = vst [vmem:[#allocation2 + $0x10] sm:$0xff] %v234
  %249 = vst [vmem:[#allocation2 + $0x18] sm:$0xff] %v235
  %250 = vst [vmem:[#allocation2 + $0x20] sm:$0xff] %v236
  %251 = vst [vmem:[#allocation2 + $0x28] sm:$0xff] %v237
  %252 = vst [vmem:[#allocation2 + $0x30] sm:$0xff] %v238
  %253 = vst [vmem:[#allocation2 + $0x38] sm:$0xff] %v239
  %254 = vst [vmem:[#allocation2 + $0x40] sm:$0xff] %v240
  %255 = vst [vmem:[#allocation2 + $0x48] sm:$0xff] %v241
  %256 = vst [vmem:[#allocation2 + $0x50] sm:$0xff] %v242
  %257 = vst [vmem:[#allocation2 + $0x58] sm:$0xff] %v243
  %258 = vst [vmem:[#allocation2 + $0x60] sm:$0xff] %v244
  %259 = vst [vmem:[#allocation2 + $0x68] sm:$0xff] %v245
  %v260 = vld [vmem:[%s2] sm:$0xff]
  %v261 = vld [vmem:[%s2 + $0x8] sm:$0xff]
  %v262 = vld [vmem:[%s2 + $0x10] sm:$0xff]
  %v263 = vld [vmem:[%s2 + $0x18] sm:$0xff]
  %v264 = vld [vmem:[%s2 + $0x20] sm:$0xff]
  %v265 = vld [vmem:[%s2 + $0x28] sm:$0xff]
  %v266 = vld [vmem:[%s2 + $0x30] sm:$0xff]
  %v267 = vld [vmem:[%s2 + $0x38] sm:$0xff]
  %v268 = vld [vmem:[%s2 + $0x40] sm:$0xff]
  %v269 = vld [vmem:[%s2 + $0x48] sm:$0xff]
  %v270 = vld [vmem:[%s2 + $0x50] sm:$0xff]
  %v271 = vld [vmem:[%s2 + $0x58] sm:$0xff]
  %v272 = vld [vmem:[%s2 + $0x60] sm:$0xff]
  %v273 = vld [vmem:[%s2 + $0x68] sm:$0xff]
  %v274 = vld [vmem:[%s2 + $0x70] sm:$0xff]
  %v275 = vld [vmem:[%s2 + $0x78] sm:$0xff]
  %v276 = vld [vmem:[%s2 + $0x80] sm:$0xff]
  %v277 = vld [vmem:[%s2 + $0x88] sm:$0xff]
  %v278 = vld [vmem:[%s2 + $0x90] sm:$0xff]
  %v279 = vld [vmem:[%s2 + $0x98] sm:$0xff]
  %v280 = vld [vmem:[%s2 + $0xa0] sm:$0xff]
  %v281 = vld [vmem:[%s2 + $0xa8] sm:$0xff]
  %v282 = vld [vmem:[%s2 + $0xb0] sm:$0xff]
  %v283 = vld [vmem:[%s2 + $0xb8] sm:$0xff]
  %v284 = vld [vmem:[%s2 + $0xc0] sm:$0xff]
  %v285 = vld [vmem:[%s2 + $0xc8] sm:$0xff]
  %v286 = vld [vmem:[%s2 + $0xd0] sm:$0xff]
  %v287 = vld [vmem:[%s2 + $0xd8] sm:$0xff]
  %v288 = vld [vmem:[%s2 + $0xe0] sm:$0xff]
  %v289 = vld [vmem:[%s2 + $0xe8] sm:$0xff]
  %v290 = vld [vmem:[%s2 + $0xf0] sm:$0xff]
  %v291 = vld [vmem:[%s2 + $0xf8] sm:$0xff]
  %s292 = smul.u32 0, 4
  %s293 = smul.addr %s292, 4
  %s294 = scalar_lea.vmem [#allocation2], %s293
  %v295 = vld [vmem:[%s294] sm:$0xff]
  %v296 = vld [vmem:[%s294 + $0x8] sm:$0xff]
  %v329 = vunpack.c.l.b16 %v260
  %v330 = vunpack.c.h.b16 %v260
  %v331 = vunpack.c.l.b16 %v261
  %v332 = vunpack.c.h.b16 %v261
  %v333 = vunpack.c.l.b16 %v262
  %v334 = vunpack.c.h.b16 %v262
  %v335 = vunpack.c.l.b16 %v263
  %v336 = vunpack.c.h.b16 %v263
  %v337 = vunpack.c.l.b16 %v264
  %v338 = vunpack.c.h.b16 %v264
  %v339 = vunpack.c.l.b16 %v265
  %v340 = vunpack.c.h.b16 %v265
  %v341 = vunpack.c.l.b16 %v266
  %v342 = vunpack.c.h.b16 %v266
  %v343 = vunpack.c.l.b16 %v267
  %v344 = vunpack.c.h.b16 %v267
  %v345 = vunpack.c.l.b16 %v268
  %v346 = vunpack.c.h.b16 %v268
  %v347 = vunpack.c.l.b16 %v269
  %v348 = vunpack.c.h.b16 %v269
  %v349 = vunpack.c.l.b16 %v270
  %v350 = vunpack.c.h.b16 %v270
  %v351 = vunpack.c.l.b16 %v271
  %v352 = vunpack.c.h.b16 %v271
  %v353 = vunpack.c.l.b16 %v272
  %v354 = vunpack.c.h.b16 %v272
  %v355 = vunpack.c.l.b16 %v273
  %v356 = vunpack.c.h.b16 %v273
  %v357 = vunpack.c.l.b16 %v274
  %v358 = vunpack.c.h.b16 %v274
  %v359 = vunpack.c.l.b16 %v275
  %v360 = vunpack.c.h.b16 %v275
  %v361 = vunpack.c.l.b16 %v276
  %v362 = vunpack.c.h.b16 %v276
  %v363 = vunpack.c.l.b16 %v277
  %v364 = vunpack.c.h.b16 %v277
  %v365 = vunpack.c.l.b16 %v278
  %v366 = vunpack.c.h.b16 %v278
  %v367 = vunpack.c.l.b16 %v279
  %v368 = vunpack.c.h.b16 %v279
  %v369 = vunpack.c.l.b16 %v280
  %v370 = vunpack.c.h.b16 %v280
  %v371 = vunpack.c.l.b16 %v281
  %v372 = vunpack.c.h.b16 %v281
  %v373 = vunpack.c.l.b16 %v282
  %v374 = vunpack.c.h.b16 %v282
  %v375 = vunpack.c.l.b16 %v283
  %v376 = vunpack.c.h.b16 %v283
  %v377 = vunpack.c.l.b16 %v284
  %v378 = vunpack.c.h.b16 %v284
  %v379 = vunpack.c.l.b16 %v285
  %v380 = vunpack.c.h.b16 %v285
  %v381 = vunpack.c.l.b16 %v286
  %v382 = vunpack.c.h.b16 %v286
  %v383 = vunpack.c.l.b16 %v287
  %v384 = vunpack.c.h.b16 %v287
  %v385 = vunpack.c.l.b16 %v288
  %v386 = vunpack.c.h.b16 %v288
  %v387 = vunpack.c.l.b16 %v289
  %v388 = vunpack.c.h.b16 %v289
  %v389 = vunpack.c.l.b16 %v290
  %v390 = vunpack.c.h.b16 %v290
  %v391 = vunpack.c.l.b16 %v291
  %v392 = vunpack.c.h.b16 %v291
  %v393 = vpack.c.b16 %v333, %v329
  %v394 = vpack.c.b16 %v334, %v330
  %v395 = vpack.c.b16 %v335, %v331
  %v396 = vpack.c.b16 %v336, %v332
  %v397 = vpack.c.b16 %v341, %v337
  %v398 = vpack.c.b16 %v342, %v338
  %v399 = vpack.c.b16 %v343, %v339
  %v400 = vpack.c.b16 %v344, %v340
  %v401 = vpack.c.b16 %v349, %v345
  %v402 = vpack.c.b16 %v350, %v346
  %v403 = vpack.c.b16 %v351, %v347
  %v404 = vpack.c.b16 %v352, %v348
  %v405 = vpack.c.b16 %v357, %v353
  %v406 = vpack.c.b16 %v358, %v354
  %v407 = vpack.c.b16 %v359, %v355
  %v408 = vpack.c.b16 %v360, %v356
  %v409 = vpack.c.b16 %v365, %v361
  %v410 = vpack.c.b16 %v366, %v362
  %v411 = vpack.c.b16 %v367, %v363
  %v412 = vpack.c.b16 %v368, %v364
  %v413 = vpack.c.b16 %v373, %v369
  %v414 = vpack.c.b16 %v374, %v370
  %v415 = vpack.c.b16 %v375, %v371
  %v416 = vpack.c.b16 %v376, %v372
  %v417 = vpack.c.b16 %v381, %v377
  %v418 = vpack.c.b16 %v382, %v378
  %v419 = vpack.c.b16 %v383, %v379
  %v420 = vpack.c.b16 %v384, %v380
  %v421 = vpack.c.b16 %v389, %v385
  %v422 = vpack.c.b16 %v390, %v386
  %v423 = vpack.c.b16 %v391, %v387
  %v424 = vpack.c.b16 %v392, %v388
  %457 = vmatpush.bf16.msra.mxu0 %v421
  %458 = vmatpush.bf16.msra.mxu0 %v417
  %459 = vmatpush.bf16.msra.mxu0 %v413
  %460 = vmatpush.bf16.msra.mxu0 %v409
  %461 = vmatpush.bf16.msra.mxu0 %v405
  %462 = vmatpush.bf16.msra.mxu0 %v401
  %463 = vmatpush.bf16.msra.mxu0 %v397
  %464 = vmatpush.bf16.msra.mxu0 %v393
  %465 = vmatmul.bf16.gmra.mxu0 0
  %v466 = vpop.f32.mrf.mxu0
  %v467 = vadd.f32 0.0, %v466
  %v468 = vpop.f32.mrf.mxu0
  %469 = vdwg.mxu0
  %470 = vmatpush.bf16.msra.mxu0 %v422
  %471 = vmatpush.bf16.msra.mxu0 %v418
  %472 = vmatpush.bf16.msra.mxu0 %v414
  %473 = vmatpush.bf16.msra.mxu0 %v410
  %474 = vmatpush.bf16.msra.mxu0 %v406
  %475 = vmatpush.bf16.msra.mxu0 %v402
  %476 = vmatpush.bf16.msra.mxu0 %v398
  %477 = vmatpush.bf16.msra.mxu0 %v394
  %478 = vmatmul.bf16.gmra.mxu0 0
  %v479 = vpop.f32.mrf.mxu0
  %v480 = vadd.f32 0.0, %v479
  %v481 = vpop.f32.mrf.mxu0
  %482 = vdwg.mxu0
  %483 = vmatpush.bf16.msra.mxu0 %v423
  %484 = vmatpush.bf16.msra.mxu0 %v419
  %485 = vmatpush.bf16.msra.mxu0 %v415
  %486 = vmatpush.bf16.msra.mxu0 %v411
  %487 = vmatpush.bf16.msra.mxu0 %v407
  %488 = vmatpush.bf16.msra.mxu0 %v403
  %489 = vmatpush.bf16.msra.mxu0 %v399
  %490 = vmatpush.bf16.msra.mxu0 %v395
  %491 = vmatmul.bf16.gmra.mxu0 0
  %v492 = vpop.f32.mrf.mxu0
  %v493 = vadd.f32 0.0, %v492
  %v494 = vpop.f32.mrf.mxu0
  %495 = vdwg.mxu0
  %496 = vmatpush.bf16.msra.mxu0 %v424
  %497 = vmatpush.bf16.msra.mxu0 %v420
  %498 = vmatpush.bf16.msra.mxu0 %v416
  %499 = vmatpush.bf16.msra.mxu0 %v412
  %500 = vmatpush.bf16.msra.mxu0 %v408
  %501 = vmatpush.bf16.msra.mxu0 %v404
  %502 = vmatpush.bf16.msra.mxu0 %v400
  %503 = vmatpush.bf16.msra.mxu0 %v396
  %504 = vmatmul.bf16.gmra.mxu0 0
  %v505 = vpop.f32.mrf.mxu0
  %v506 = vadd.f32 0.0, %v505
  %v507 = vpop.f32.mrf.mxu0
  %508 = vdwg.mxu0
  %v509 = vunpack.c.l.bf16 %v295
  %v510 = vunpack.c.h.bf16 %v295
  %v511 = vunpack.c.l.bf16 %v296
  %v512 = vunpack.c.h.bf16 %v296
  %v513 = vadd.f32 %v509, %v467
  %v514 = vadd.f32 %v510, %v480
  %v515 = vadd.f32 %v511, %v493
  %v516 = vadd.f32 %v512, %v506
  %v517 = vxor.u32 %v513, 2147483648
  %v518 = vmul.f32 %v517, 1.442695
  %v519 = vpow.pop %v518
  %v520 = vadd.f32 %v519, 1.0
  %v521 = vrcp.pop %v520
  %v522 = vmul.f32 %v520, %v521
  %v523 = vsub.f32 1.0, %v522
  %v524 = vmul.f32 %v521, %v523
  %v525 = vadd.f32 %v521, %v524
  %vm526 = vweird.f32 %v520
  %vm527 = vweird.f32 %v521
  %vm528 = vmor %vm526, %vm527
  %v529 = vsel %vm528, %v521, %v525
  %v530 = vand.u32 2147483647, %v520
  %vm531 = vcmp.eq.f32.partialorder %v530, 8.507059e+37
  %v532 = vand.u32 %v520, 2147483648
  %v533 = vor.u32 1.1754944e-38, %v532
  %v534 = vsel %vm531, %v533, %v529
  %v535 = vmul.f32 1.0, %v534
  %v536 = vxor.u32 %v514, 2147483648
  %v537 = vmul.f32 %v536, 1.442695
  %v538 = vpow.pop %v537
  %v539 = vadd.f32 %v538, 1.0
  %v540 = vrcp.pop %v539
  %v541 = vmul.f32 %v539, %v540
  %v542 = vsub.f32 1.0, %v541
  %v543 = vmul.f32 %v540, %v542
  %v544 = vadd.f32 %v540, %v543
  %vm545 = vweird.f32 %v539
  %vm546 = vweird.f32 %v540
  %vm547 = vmor %vm545, %vm546
  %v548 = vsel %vm547, %v540, %v544
  %v549 = vand.u32 2147483647, %v539
  %vm550 = vcmp.eq.f32.partialorder %v549, 8.507059e+37
  %v551 = vand.u32 %v539, 2147483648
  %v552 = vor.u32 1.1754944e-38, %v551
  %v553 = vsel %vm550, %v552, %v548
  %v554 = vmul.f32 1.0, %v553
  %v555 = vtanh.pop %v515
  %v556 = vxor.u32 %v516, 2147483648
  %v557 = vmul.f32 %v556, 1.442695
  %v558 = vpow.pop %v557
  %v559 = vadd.f32 %v558, 1.0
  %v560 = vrcp.pop %v559
  %v561 = vmul.f32 %v559, %v560
  %v562 = vsub.f32 1.0, %v561
  %v563 = vmul.f32 %v560, %v562
  %v564 = vadd.f32 %v560, %v563
  %vm565 = vweird.f32 %v559
  %vm566 = vweird.f32 %v560
  %vm567 = vmor %vm565, %vm566
  %v568 = vsel %vm567, %v560, %v564
  %v569 = vand.u32 2147483647, %v559
  %vm570 = vcmp.eq.f32.partialorder %v569, 8.507059e+37
  %v571 = vand.u32 %v559, 2147483648
  %v572 = vor.u32 1.1754944e-38, %v571
  %v573 = vsel %vm570, %v572, %v568
  %v574 = vmul.f32 1.0, %v573
  %v575 = vmul.f32 %v554, 0.0
  %v576 = vmul.f32 %v535, %v555
  %v577 = vadd.f32 %v575, %v576
  %v578 = vtanh.pop %v577
  %v579 = vmul.f32 %v574, %v578
  %v580 = vpack.c.bf16 %v579, %v579
  %581 = vst [vmem:[#allocation3] sm:$0xf] %v580
  %s582 = smul.u32 1, 4
  %s583 = smul.addr %s582, 4
  %s584 = scalar_lea.vmem [#allocation2], %s583
  %v585 = vld [vmem:[%s584] sm:$0xff]
  %v586 = vld [vmem:[%s584 + $0x8] sm:$0xff]
  %587 = vmatpush.bf16.msra.mxu0 %v421
  %588 = vmatpush.bf16.msra.mxu0 %v417
  %589 = vmatpush.bf16.msra.mxu0 %v413
  %590 = vmatpush.bf16.msra.mxu0 %v409
  %591 = vmatpush.bf16.msra.mxu0 %v405
  %592 = vmatpush.bf16.msra.mxu0 %v401
  %593 = vmatpush.bf16.msra.mxu0 %v397
  %594 = vmatpush.bf16.msra.mxu0 %v393
  %595 = vmatmul.bf16.gmra.mxu0 %v580
  %v596 = vpop.f32.mrf.mxu0
  %v597 = vadd.f32 0.0, %v596
  %v598 = vpop.f32.mrf.mxu0
  %599 = vdwg.mxu0
  %600 = vmatpush.bf16.msra.mxu0 %v422
  %601 = vmatpush.bf16.msra.mxu0 %v418
  %602 = vmatpush.bf16.msra.mxu0 %v414
  %603 = vmatpush.bf16.msra.mxu0 %v410
  %604 = vmatpush.bf16.msra.mxu0 %v406
  %605 = vmatpush.bf16.msra.mxu0 %v402
  %606 = vmatpush.bf16.msra.mxu0 %v398
  %607 = vmatpush.bf16.msra.mxu0 %v394
  %608 = vmatmul.bf16.gmra.mxu0 %v580
  %v609 = vpop.f32.mrf.mxu0
  %v610 = vadd.f32 0.0, %v609
  %v611 = vpop.f32.mrf.mxu0
  %612 = vdwg.mxu0
  %613 = vmatpush.bf16.msra.mxu0 %v423
  %614 = vmatpush.bf16.msra.mxu0 %v419
  %615 = vmatpush.bf16.msra.mxu0 %v415
  %616 = vmatpush.bf16.msra.mxu0 %v411
  %617 = vmatpush.bf16.msra.mxu0 %v407
  %618 = vmatpush.bf16.msra.mxu0 %v403
  %619 = vmatpush.bf16.msra.mxu0 %v399
  %620 = vmatpush.bf16.msra.mxu0 %v395
  %621 = vmatmul.bf16.gmra.mxu0 %v580
  %v622 = vpop.f32.mrf.mxu0
  %v623 = vadd.f32 0.0, %v622
  %v624 = vpop.f32.mrf.mxu0
  %625 = vdwg.mxu0
  %626 = vmatpush.bf16.msra.mxu0 %v424
  %627 = vmatpush.bf16.msra.mxu0 %v420
  %628 = vmatpush.bf16.msra.mxu0 %v416
  %629 = vmatpush.bf16.msra.mxu0 %v412
  %630 = vmatpush.bf16.msra.mxu0 %v408
  %631 = vmatpush.bf16.msra.mxu0 %v404
  %632 = vmatpush.bf16.msra.mxu0 %v400
  %633 = vmatpush.bf16.msra.mxu0 %v396
  %634 = vmatmul.bf16.gmra.mxu0 %v580
  %v635 = vpop.f32.mrf.mxu0
  %v636 = vadd.f32 0.0, %v635
  %v637 = vpop.f32.mrf.mxu0
  %638 = vdwg.mxu0
  %v639 = vunpack.c.l.bf16 %v585
  %v640 = vunpack.c.h.bf16 %v585
  %v641 = vunpack.c.l.bf16 %v586
  %v642 = vunpack.c.h.bf16 %v586
  %v643 = vadd.f32 %v639, %v597
  %v644 = vadd.f32 %v640, %v610
  %v645 = vadd.f32 %v641, %v623
  %v646 = vadd.f32 %v642, %v636
  %v647 = vxor.u32 %v643, 2147483648
  %v648 = vmul.f32 %v647, 1.442695
  %v649 = vpow.pop %v648
  %v650 = vadd.f32 %v649, 1.0
  %v651 = vrcp.pop %v650
  %v652 = vmul.f32 %v650, %v651
  %v653 = vsub.f32 1.0, %v652
  %v654 = vmul.f32 %v651, %v653
  %v655 = vadd.f32 %v651, %v654
  %vm656 = vweird.f32 %v650
  %vm657 = vweird.f32 %v651
  %vm658 = vmor %vm656, %vm657
  %v659 = vsel %vm658, %v651, %v655
  %v660 = vand.u32 2147483647, %v650
  %vm661 = vcmp.eq.f32.partialorder %v660, 8.507059e+37
  %v662 = vand.u32 %v650, 2147483648
  %v663 = vor.u32 1.1754944e-38, %v662
  %v664 = vsel %vm661, %v663, %v659
  %v665 = vmul.f32 1.0, %v664
  %v666 = vxor.u32 %v644, 2147483648
  %v667 = vmul.f32 %v666, 1.442695
  %v668 = vpow.pop %v667
  %v669 = vadd.f32 %v668, 1.0
  %v670 = vrcp.pop %v669
  %v671 = vmul.f32 %v669, %v670
  %v672 = vsub.f32 1.0, %v671
  %v673 = vmul.f32 %v670, %v672
  %v674 = vadd.f32 %v670, %v673
  %vm675 = vweird.f32 %v669
  %vm676 = vweird.f32 %v670
  %vm677 = vmor %vm675, %vm676
  %v678 = vsel %vm677, %v670, %v674
  %v679 = vand.u32 2147483647, %v669
  %vm680 = vcmp.eq.f32.partialorder %v679, 8.507059e+37
  %v681 = vand.u32 %v669, 2147483648
  %v682 = vor.u32 1.1754944e-38, %v681
  %v683 = vsel %vm680, %v682, %v678
  %v684 = vmul.f32 1.0, %v683
  %v685 = vtanh.pop %v645
  %v686 = vxor.u32 %v646, 2147483648
  %v687 = vmul.f32 %v686, 1.442695
  %v688 = vpow.pop %v687
  %v689 = vadd.f32 %v688, 1.0
  %v690 = vrcp.pop %v689
  %v691 = vmul.f32 %v689, %v690
  %v692 = vsub.f32 1.0, %v691
  %v693 = vmul.f32 %v690, %v692
  %v694 = vadd.f32 %v690, %v693
  %vm695 = vweird.f32 %v689
  %vm696 = vweird.f32 %v690
  %vm697 = vmor %vm695, %vm696
  %v698 = vsel %vm697, %v690, %v694
  %v699 = vand.u32 2147483647, %v689
  %vm700 = vcmp.eq.f32.partialorder %v699, 8.507059e+37
  %v701 = vand.u32 %v689, 2147483648
  %v702 = vor.u32 1.1754944e-38, %v701
  %v703 = vsel %vm700, %v702, %v698
  %v704 = vmul.f32 1.0, %v703
  %v705 = vmul.f32 %v684, %v577
  %v706 = vmul.f32 %v665, %v685
  %v707 = vadd.f32 %v705, %v706
  %v708 = vtanh.pop %v707
  %v709 = vmul.f32 %v704, %v708
  %v710 = vpack.c.bf16 %v709, %v709
  %s711 = scalar_lea.vmem [#allocation3], 4
  %712 = vst [vmem:[%s711] sm:$0xf] %v710
  %s713 = smul.u32 2, 4
  %s714 = smul.addr %s713, 4
  %s715 = scalar_lea.vmem [#allocation2], %s714
  %v716 = vld [vmem:[%s715] sm:$0xff]
  %v717 = vld [vmem:[%s715 + $0x8] sm:$0xff]
  %718 = vmatpush.bf16.msra.mxu0 %v421
  %719 = vmatpush.bf16.msra.mxu0 %v417
  %720 = vmatpush.bf16.msra.mxu0 %v413
  %721 = vmatpush.bf16.msra.mxu0 %v409
  %722 = vmatpush.bf16.msra.mxu0 %v405
  %723 = vmatpush.bf16.msra.mxu0 %v401
  %724 = vmatpush.bf16.msra.mxu0 %v397
  %725 = vmatpush.bf16.msra.mxu0 %v393
  %726 = vmatmul.bf16.gmra.mxu0 %v710
  %v727 = vpop.f32.mrf.mxu0
  %v728 = vadd.f32 0.0, %v727
  %v729 = vpop.f32.mrf.mxu0
  %730 = vdwg.mxu0
  %731 = vmatpush.bf16.msra.mxu0 %v422
  %732 = vmatpush.bf16.msra.mxu0 %v418
  %733 = vmatpush.bf16.msra.mxu0 %v414
  %734 = vmatpush.bf16.msra.mxu0 %v410
  %735 = vmatpush.bf16.msra.mxu0 %v406
  %736 = vmatpush.bf16.msra.mxu0 %v402
  %737 = vmatpush.bf16.msra.mxu0 %v398
  %738 = vmatpush.bf16.msra.mxu0 %v394
  %739 = vmatmul.bf16.gmra.mxu0 %v710
  %v740 = vpop.f32.mrf.mxu0
  %v741 = vadd.f32 0.0, %v740
  %v742 = vpop.f32.mrf.mxu0
  %743 = vdwg.mxu0
  %744 = vmatpush.bf16.msra.mxu0 %v423
  %745 = vmatpush.bf16.msra.mxu0 %v419
  %746 = vmatpush.bf16.msra.mxu0 %v415
  %747 = vmatpush.bf16.msra.mxu0 %v411
  %748 = vmatpush.bf16.msra.mxu0 %v407
  %749 = vmatpush.bf16.msra.mxu0 %v403
  %750 = vmatpush.bf16.msra.mxu0 %v399
  %751 = vmatpush.bf16.msra.mxu0 %v395
  %752 = vmatmul.bf16.gmra.mxu0 %v710
  %v753 = vpop.f32.mrf.mxu0
  %v754 = vadd.f32 0.0, %v753
  %v755 = vpop.f32.mrf.mxu0
  %756 = vdwg.mxu0
  %757 = vmatpush.bf16.msra.mxu0 %v424
  %758 = vmatpush.bf16.msra.mxu0 %v420
  %759 = vmatpush.bf16.msra.mxu0 %v416
  %760 = vmatpush.bf16.msra.mxu0 %v412
  %761 = vmatpush.bf16.msra.mxu0 %v408
  %762 = vmatpush.bf16.msra.mxu0 %v404
  %763 = vmatpush.bf16.msra.mxu0 %v400
  %764 = vmatpush.bf16.msra.mxu0 %v396
  %765 = vmatmul.bf16.gmra.mxu0 %v710
  %v766 = vpop.f32.mrf.mxu0
  %v767 = vadd.f32 0.0, %v766
  %v768 = vpop.f32.mrf.mxu0
  %769 = vdwg.mxu0
  %v770 = vunpack.c.l.bf16 %v716
  %v771 = vunpack.c.h.bf16 %v716
  %v772 = vunpack.c.l.bf16 %v717
  %v773 = vunpack.c.h.bf16 %v717
  %v774 = vadd.f32 %v770, %v728
  %v775 = vadd.f32 %v771, %v741
  %v776 = vadd.f32 %v772, %v754
  %v777 = vadd.f32 %v773, %v767
  %v778 = vxor.u32 %v774, 2147483648
  %v779 = vmul.f32 %v778, 1.442695
  %v780 = vpow.pop %v779
  %v781 = vadd.f32 %v780, 1.0
  %v782 = vrcp.pop %v781
  %v783 = vmul.f32 %v781, %v782
  %v784 = vsub.f32 1.0, %v783
  %v785 = vmul.f32 %v782, %v784
  %v786 = vadd.f32 %v782, %v785
  %vm787 = vweird.f32 %v781
  %vm788 = vweird.f32 %v782
  %vm789 = vmor %vm787, %vm788
  %v790 = vsel %vm789, %v782, %v786
  %v791 = vand.u32 2147483647, %v781
  %vm792 = vcmp.eq.f32.partialorder %v791, 8.507059e+37
  %v793 = vand.u32 %v781, 2147483648
  %v794 = vor.u32 1.1754944e-38, %v793
  %v795 = vsel %vm792, %v794, %v790
  %v796 = vmul.f32 1.0, %v795
  %v797 = vxor.u32 %v775, 2147483648
  %v798 = vmul.f32 %v797, 1.442695
  %v799 = vpow.pop %v798
  %v800 = vadd.f32 %v799, 1.0
  %v801 = vrcp.pop %v800
  %v802 = vmul.f32 %v800, %v801
  %v803 = vsub.f32 1.0, %v802
  %v804 = vmul.f32 %v801, %v803
  %v805 = vadd.f32 %v801, %v804
  %vm806 = vweird.f32 %v800
  %vm807 = vweird.f32 %v801
  %vm808 = vmor %vm806, %vm807
  %v809 = vsel %vm808, %v801, %v805
  %v810 = vand.u32 2147483647, %v800
  %vm811 = vcmp.eq.f32.partialorder %v810, 8.507059e+37
  %v812 = vand.u32 %v800, 2147483648
  %v813 = vor.u32 1.1754944e-38, %v812
  %v814 = vsel %vm811, %v813, %v809
  %v815 = vmul.f32 1.0, %v814
  %v816 = vtanh.pop %v776
  %v817 = vxor.u32 %v777, 2147483648
  %v818 = vmul.f32 %v817, 1.442695
  %v819 = vpow.pop %v818
  %v820 = vadd.f32 %v819, 1.0
  %v821 = vrcp.pop %v820
  %v822 = vmul.f32 %v820, %v821
  %v823 = vsub.f32 1.0, %v822
  %v824 = vmul.f32 %v821, %v823
  %v825 = vadd.f32 %v821, %v824
  %vm826 = vweird.f32 %v820
  %vm827 = vweird.f32 %v821
  %vm828 = vmor %vm826, %vm827
  %v829 = vsel %vm828, %v821, %v825
  %v830 = vand.u32 2147483647, %v820
  %vm831 = vcmp.eq.f32.partialorder %v830, 8.507059e+37
  %v832 = vand.u32 %v820, 2147483648
  %v833 = vor.u32 1.1754944e-38, %v832
  %v834 = vsel %vm831, %v833, %v829
  %v835 = vmul.f32 1.0, %v834
  %v836 = vmul.f32 %v815, %v707
  %v837 = vmul.f32 %v796, %v816
  %v838 = vadd.f32 %v836, %v837
  %v839 = vtanh.pop %v838
  %v840 = vmul.f32 %v835, %v839
  %v841 = vpack.c.bf16 %v840, %v840
  %s842 = scalar_lea.vmem [#allocation3], 8
  %843 = vst [vmem:[%s842] sm:$0xf] %v841
  %s844 = smul.u32 3, 4
  %s845 = smul.addr %s844, 4
  %s846 = scalar_lea.vmem [#allocation2], %s845
  %v847 = vld [vmem:[%s846] sm:$0xff]
  %v848 = vld [vmem:[%s846 + $0x8] sm:$0xff]
  %849 = vmatpush.bf16.msra.mxu0 %v421
  %850 = vmatpush.bf16.msra.mxu0 %v417
  %851 = vmatpush.bf16.msra.mxu0 %v413
  %852 = vmatpush.bf16.msra.mxu0 %v409
  %853 = vmatpush.bf16.msra.mxu0 %v405
  %854 = vmatpush.bf16.msra.mxu0 %v401
  %855 = vmatpush.bf16.msra.mxu0 %v397
  %856 = vmatpush.bf16.msra.mxu0 %v393
  %857 = vmatmul.bf16.gmra.mxu0 %v841
  %v858 = vpop.f32.mrf.mxu0
  %v859 = vadd.f32 0.0, %v858
  %v860 = vpop.f32.mrf.mxu0
  %861 = vdwg.mxu0
  %862 = vmatpush.bf16.msra.mxu0 %v422
  %863 = vmatpush.bf16.msra.mxu0 %v418
  %864 = vmatpush.bf16.msra.mxu0 %v414
  %865 = vmatpush.bf16.msra.mxu0 %v410
  %866 = vmatpush.bf16.msra.mxu0 %v406
  %867 = vmatpush.bf16.msra.mxu0 %v402
  %868 = vmatpush.bf16.msra.mxu0 %v398
  %869 = vmatpush.bf16.msra.mxu0 %v394
  %870 = vmatmul.bf16.gmra.mxu0 %v841
  %v871 = vpop.f32.mrf.mxu0
  %v872 = vadd.f32 0.0, %v871
  %v873 = vpop.f32.mrf.mxu0
  %874 = vdwg.mxu0
  %875 = vmatpush.bf16.msra.mxu0 %v423
  %876 = vmatpush.bf16.msra.mxu0 %v419
  %877 = vmatpush.bf16.msra.mxu0 %v415
  %878 = vmatpush.bf16.msra.mxu0 %v411
  %879 = vmatpush.bf16.msra.mxu0 %v407
  %880 = vmatpush.bf16.msra.mxu0 %v403
  %881 = vmatpush.bf16.msra.mxu0 %v399
  %882 = vmatpush.bf16.msra.mxu0 %v395
  %883 = vmatmul.bf16.gmra.mxu0 %v841
  %v884 = vpop.f32.mrf.mxu0
  %v885 = vadd.f32 0.0, %v884
  %v886 = vpop.f32.mrf.mxu0
  %887 = vdwg.mxu0
  %888 = vmatpush.bf16.msra.mxu0 %v424
  %889 = vmatpush.bf16.msra.mxu0 %v420
  %890 = vmatpush.bf16.msra.mxu0 %v416
  %891 = vmatpush.bf16.msra.mxu0 %v412
  %892 = vmatpush.bf16.msra.mxu0 %v408
  %893 = vmatpush.bf16.msra.mxu0 %v404
  %894 = vmatpush.bf16.msra.mxu0 %v400
  %895 = vmatpush.bf16.msra.mxu0 %v396
  %896 = vmatmul.bf16.gmra.mxu0 %v841
  %v897 = vpop.f32.mrf.mxu0
  %v898 = vadd.f32 0.0, %v897
  %v899 = vpop.f32.mrf.mxu0
  %900 = vdwg.mxu0
  %v901 = vunpack.c.l.bf16 %v847
  %v902 = vunpack.c.h.bf16 %v847
  %v903 = vunpack.c.l.bf16 %v848
  %v904 = vunpack.c.h.bf16 %v848
  %v905 = vadd.f32 %v901, %v859
  %v906 = vadd.f32 %v902, %v872
  %v907 = vadd.f32 %v903, %v885
  %v908 = vadd.f32 %v904, %v898
  %v909 = vxor.u32 %v905, 2147483648
  %v910 = vmul.f32 %v909, 1.442695
  %v911 = vpow.pop %v910
  %v912 = vadd.f32 %v911, 1.0
  %v913 = vrcp.pop %v912
  %v914 = vmul.f32 %v912, %v913
  %v915 = vsub.f32 1.0, %v914
  %v916 = vmul.f32 %v913, %v915
  %v917 = vadd.f32 %v913, %v916
  %vm918 = vweird.f32 %v912
  %vm919 = vweird.f32 %v913
  %vm920 = vmor %vm918, %vm919
  %v921 = vsel %vm920, %v913, %v917
  %v922 = vand.u32 2147483647, %v912
  %vm923 = vcmp.eq.f32.partialorder %v922, 8.507059e+37
  %v924 = vand.u32 %v912, 2147483648
  %v925 = vor.u32 1.1754944e-38, %v924
  %v926 = vsel %vm923, %v925, %v921
  %v927 = vmul.f32 1.0, %v926
  %v928 = vxor.u32 %v906, 2147483648
  %v929 = vmul.f32 %v928, 1.442695
  %v930 = vpow.pop %v929
  %v931 = vadd.f32 %v930, 1.0
  %v932 = vrcp.pop %v931
  %v933 = vmul.f32 %v931, %v932
  %v934 = vsub.f32 1.0, %v933
  %v935 = vmul.f32 %v932, %v934
  %v936 = vadd.f32 %v932, %v935
  %vm937 = vweird.f32 %v931
  %vm938 = vweird.f32 %v932
  %vm939 = vmor %vm937, %vm938
  %v940 = vsel %vm939, %v932, %v936
  %v941 = vand.u32 2147483647, %v931
  %vm942 = vcmp.eq.f32.partialorder %v941, 8.507059e+37
  %v943 = vand.u32 %v931, 2147483648
  %v944 = vor.u32 1.1754944e-38, %v943
  %v945 = vsel %vm942, %v944, %v940
  %v946 = vmul.f32 1.0, %v945
  %v947 = vtanh.pop %v907
  %v948 = vxor.u32 %v908, 2147483648
  %v949 = vmul.f32 %v948, 1.442695
  %v950 = vpow.pop %v949
  %v951 = vadd.f32 %v950, 1.0
  %v952 = vrcp.pop %v951
  %v953 = vmul.f32 %v951, %v952
  %v954 = vsub.f32 1.0, %v953
  %v955 = vmul.f32 %v952, %v954
  %v956 = vadd.f32 %v952, %v955
  %vm957 = vweird.f32 %v951
  %vm958 = vweird.f32 %v952
  %vm959 = vmor %vm957, %vm958
  %v960 = vsel %vm959, %v952, %v956
  %v961 = vand.u32 2147483647, %v951
  %vm962 = vcmp.eq.f32.partialorder %v961, 8.507059e+37
  %v963 = vand.u32 %v951, 2147483648
  %v964 = vor.u32 1.1754944e-38, %v963
  %v965 = vsel %vm962, %v964, %v960
  %v966 = vmul.f32 1.0, %v965
  %v967 = vmul.f32 %v946, %v838
  %v968 = vmul.f32 %v927, %v947
  %v969 = vadd.f32 %v967, %v968
  %v970 = vtanh.pop %v969
  %v971 = vmul.f32 %v966, %v970
  %v972 = vpack.c.bf16 %v971, %v971
  %s973 = scalar_lea.vmem [#allocation3], 12
  %974 = vst [vmem:[%s973] sm:$0xf] %v972
  %s975 = smul.u32 4, 4
  %s976 = smul.addr %s975, 4
  %s977 = scalar_lea.vmem [#allocation2], %s976
  %v978 = vld [vmem:[%s977] sm:$0xff]
  %v979 = vld [vmem:[%s977 + $0x8] sm:$0xff]
  %980 = vmatpush.bf16.msra.mxu0 %v421
  %981 = vmatpush.bf16.msra.mxu0 %v417
  %982 = vmatpush.bf16.msra.mxu0 %v413
  %983 = vmatpush.bf16.msra.mxu0 %v409
  %984 = vmatpush.bf16.msra.mxu0 %v405
  %985 = vmatpush.bf16.msra.mxu0 %v401
  %986 = vmatpush.bf16.msra.mxu0 %v397
  %987 = vmatpush.bf16.msra.mxu0 %v393
  %988 = vmatmul.bf16.gmra.mxu0 %v972
  %v989 = vpop.f32.mrf.mxu0
  %v990 = vadd.f32 0.0, %v989
  %v991 = vpop.f32.mrf.mxu0
  %992 = vdwg.mxu0
  %993 = vmatpush.bf16.msra.mxu0 %v422
  %994 = vmatpush.bf16.msra.mxu0 %v418
  %995 = vmatpush.bf16.msra.mxu0 %v414
  %996 = vmatpush.bf16.msra.mxu0 %v410
  %997 = vmatpush.bf16.msra.mxu0 %v406
  %998 = vmatpush.bf16.msra.mxu0 %v402
  %999 = vmatpush.bf16.msra.mxu0 %v398
  %1000 = vmatpush.bf16.msra.mxu0 %v394
  %1001 = vmatmul.bf16.gmra.mxu0 %v972
  %v1002 = vpop.f32.mrf.mxu0
  %v1003 = vadd.f32 0.0, %v1002
  %v1004 = vpop.f32.mrf.mxu0
  %1005 = vdwg.mxu0
  %1006 = vmatpush.bf16.msra.mxu0 %v423
  %1007 = vmatpush.bf16.msra.mxu0 %v419
  %1008 = vmatpush.bf16.msra.mxu0 %v415
  %1009 = vmatpush.bf16.msra.mxu0 %v411
  %1010 = vmatpush.bf16.msra.mxu0 %v407
  %1011 = vmatpush.bf16.msra.mxu0 %v403
  %1012 = vmatpush.bf16.msra.mxu0 %v399
  %1013 = vmatpush.bf16.msra.mxu0 %v395
  %1014 = vmatmul.bf16.gmra.mxu0 %v972
  %v1015 = vpop.f32.mrf.mxu0
  %v1016 = vadd.f32 0.0, %v1015
  %v1017 = vpop.f32.mrf.mxu0
  %1018 = vdwg.mxu0
  %1019 = vmatpush.bf16.msra.mxu0 %v424
  %1020 = vmatpush.bf16.msra.mxu0 %v420
  %1021 = vmatpush.bf16.msra.mxu0 %v416
  %1022 = vmatpush.bf16.msra.mxu0 %v412
  %1023 = vmatpush.bf16.msra.mxu0 %v408
  %1024 = vmatpush.bf16.msra.mxu0 %v404
  %1025 = vmatpush.bf16.msra.mxu0 %v400
  %1026 = vmatpush.bf16.msra.mxu0 %v396
  %1027 = vmatmul.bf16.gmra.mxu0 %v972
  %v1028 = vpop.f32.mrf.mxu0
  %v1029 = vadd.f32 0.0, %v1028
  %v1030 = vpop.f32.mrf.mxu0
  %1031 = vdwg.mxu0
  %v1032 = vunpack.c.l.bf16 %v978
  %v1033 = vunpack.c.h.bf16 %v978
  %v1034 = vunpack.c.l.bf16 %v979
  %v1035 = vunpack.c.h.bf16 %v979
  %v1036 = vadd.f32 %v1032, %v990
  %v1037 = vadd.f32 %v1033, %v1003
  %v1038 = vadd.f32 %v1034, %v1016
  %v1039 = vadd.f32 %v1035, %v1029
  %v1040 = vxor.u32 %v1036, 2147483648
  %v1041 = vmul.f32 %v1040, 1.442695
  %v1042 = vpow.pop %v1041
  %v1043 = vadd.f32 %v1042, 1.0
  %v1044 = vrcp.pop %v1043
  %v1045 = vmul.f32 %v1043, %v1044
  %v1046 = vsub.f32 1.0, %v1045
  %v1047 = vmul.f32 %v1044, %v1046
  %v1048 = vadd.f32 %v1044, %v1047
  %vm1049 = vweird.f32 %v1043
  %vm1050 = vweird.f32 %v1044
  %vm1051 = vmor %vm1049, %vm1050
  %v1052 = vsel %vm1051, %v1044, %v1048
  %v1053 = vand.u32 2147483647, %v1043
  %vm1054 = vcmp.eq.f32.partialorder %v1053, 8.507059e+37
  %v1055 = vand.u32 %v1043, 2147483648
  %v1056 = vor.u32 1.1754944e-38, %v1055
  %v1057 = vsel %vm1054, %v1056, %v1052
  %v1058 = vmul.f32 1.0, %v1057
  %v1059 = vxor.u32 %v1037, 2147483648
  %v1060 = vmul.f32 %v1059, 1.442695
  %v1061 = vpow.pop %v1060
  %v1062 = vadd.f32 %v1061, 1.0
  %v1063 = vrcp.pop %v1062
  %v1064 = vmul.f32 %v1062, %v1063
  %v1065 = vsub.f32 1.0, %v1064
  %v1066 = vmul.f32 %v1063, %v1065
  %v1067 = vadd.f32 %v1063, %v1066
  %vm1068 = vweird.f32 %v1062
  %vm1069 = vweird.f32 %v1063
  %vm1070 = vmor %vm1068, %vm1069
  %v1071 = vsel %vm1070, %v1063, %v1067
  %v1072 = vand.u32 2147483647, %v1062
  %vm1073 = vcmp.eq.f32.partialorder %v1072, 8.507059e+37
  %v1074 = vand.u32 %v1062, 2147483648
  %v1075 = vor.u32 1.1754944e-38, %v1074
  %v1076 = vsel %vm1073, %v1075, %v1071
  %v1077 = vmul.f32 1.0, %v1076
  %v1078 = vtanh.pop %v1038
  %v1079 = vxor.u32 %v1039, 2147483648
  %v1080 = vmul.f32 %v1079, 1.442695
  %v1081 = vpow.pop %v1080
  %v1082 = vadd.f32 %v1081, 1.0
  %v1083 = vrcp.pop %v1082
  %v1084 = vmul.f32 %v1082, %v1083
  %v1085 = vsub.f32 1.0, %v1084
  %v1086 = vmul.f32 %v1083, %v1085
  %v1087 = vadd.f32 %v1083, %v1086
  %vm1088 = vweird.f32 %v1082
  %vm1089 = vweird.f32 %v1083
  %vm1090 = vmor %vm1088, %vm1089
  %v1091 = vsel %vm1090, %v1083, %v1087
  %v1092 = vand.u32 2147483647, %v1082
  %vm1093 = vcmp.eq.f32.partialorder %v1092, 8.507059e+37
  %v1094 = vand.u32 %v1082, 2147483648
  %v1095 = vor.u32 1.1754944e-38, %v1094
  %v1096 = vsel %vm1093, %v1095, %v1091
  %v1097 = vmul.f32 1.0, %v1096
  %v1098 = vmul.f32 %v1077, %v969
  %v1099 = vmul.f32 %v1058, %v1078
  %v1100 = vadd.f32 %v1098, %v1099
  %v1101 = vtanh.pop %v1100
  %v1102 = vmul.f32 %v1097, %v1101
  %v1103 = vpack.c.bf16 %v1102, %v1102
  %s1104 = scalar_lea.vmem [#allocation3], 16
  %1105 = vst [vmem:[%s1104] sm:$0xf] %v1103
  %s1106 = smul.u32 5, 4
  %s1107 = smul.addr %s1106, 4
  %s1108 = scalar_lea.vmem [#allocation2], %s1107
  %v1109 = vld [vmem:[%s1108] sm:$0xff]
  %v1110 = vld [vmem:[%s1108 + $0x8] sm:$0xff]
  %1111 = vmatpush.bf16.msra.mxu0 %v421
  %1112 = vmatpush.bf16.msra.mxu0 %v417
  %1113 = vmatpush.bf16.msra.mxu0 %v413
  %1114 = vmatpush.bf16.msra.mxu0 %v409
  %1115 = vmatpush.bf16.msra.mxu0 %v405
  %1116 = vmatpush.bf16.msra.mxu0 %v401
  %1117 = vmatpush.bf16.msra.mxu0 %v397
  %1118 = vmatpush.bf16.msra.mxu0 %v393
  %1119 = vmatmul.bf16.gmra.mxu0 %v1103
  %v1120 = vpop.f32.mrf.mxu0
  %v1121 = vadd.f32 0.0, %v1120
  %v1122 = vpop.f32.mrf.mxu0
  %1123 = vdwg.mxu0
  %1124 = vmatpush.bf16.msra.mxu0 %v422
  %1125 = vmatpush.bf16.msra.mxu0 %v418
  %1126 = vmatpush.bf16.msra.mxu0 %v414
  %1127 = vmatpush.bf16.msra.mxu0 %v410
  %1128 = vmatpush.bf16.msra.mxu0 %v406
  %1129 = vmatpush.bf16.msra.mxu0 %v402
  %1130 = vmatpush.bf16.msra.mxu0 %v398
  %1131 = vmatpush.bf16.msra.mxu0 %v394
  %1132 = vmatmul.bf16.gmra.mxu0 %v1103
  %v1133 = vpop.f32.mrf.mxu0
  %v1134 = vadd.f32 0.0, %v1133
  %v1135 = vpop.f32.mrf.mxu0
  %1136 = vdwg.mxu0
  %1137 = vmatpush.bf16.msra.mxu0 %v423
  %1138 = vmatpush.bf16.msra.mxu0 %v419
  %1139 = vmatpush.bf16.msra.mxu0 %v415
  %1140 = vmatpush.bf16.msra.mxu0 %v411
  %1141 = vmatpush.bf16.msra.mxu0 %v407
  %1142 = vmatpush.bf16.msra.mxu0 %v403
  %1143 = vmatpush.bf16.msra.mxu0 %v399
  %1144 = vmatpush.bf16.msra.mxu0 %v395
  %1145 = vmatmul.bf16.gmra.mxu0 %v1103
  %v1146 = vpop.f32.mrf.mxu0
  %v1147 = vadd.f32 0.0, %v1146
  %v1148 = vpop.f32.mrf.mxu0
  %1149 = vdwg.mxu0
  %1150 = vmatpush.bf16.msra.mxu0 %v424
  %1151 = vmatpush.bf16.msra.mxu0 %v420
  %1152 = vmatpush.bf16.msra.mxu0 %v416
  %1153 = vmatpush.bf16.msra.mxu0 %v412
  %1154 = vmatpush.bf16.msra.mxu0 %v408
  %1155 = vmatpush.bf16.msra.mxu0 %v404
  %1156 = vmatpush.bf16.msra.mxu0 %v400
  %1157 = vmatpush.bf16.msra.mxu0 %v396
  %1158 = vmatmul.bf16.gmra.mxu0 %v1103
  %v1159 = vpop.f32.mrf.mxu0
  %v1160 = vadd.f32 0.0, %v1159
  %v1161 = vpop.f32.mrf.mxu0
  %1162 = vdwg.mxu0
  %v1163 = vunpack.c.l.bf16 %v1109
  %v1164 = vunpack.c.h.bf16 %v1109
  %v1165 = vunpack.c.l.bf16 %v1110
  %v1166 = vunpack.c.h.bf16 %v1110
  %v1167 = vadd.f32 %v1163, %v1121
  %v1168 = vadd.f32 %v1164, %v1134
  %v1169 = vadd.f32 %v1165, %v1147
  %v1170 = vadd.f32 %v1166, %v1160
  %v1171 = vxor.u32 %v1167, 2147483648
  %v1172 = vmul.f32 %v1171, 1.442695
  %v1173 = vpow.pop %v1172
  %v1174 = vadd.f32 %v1173, 1.0
  %v1175 = vrcp.pop %v1174
  %v1176 = vmul.f32 %v1174, %v1175
  %v1177 = vsub.f32 1.0, %v1176
  %v1178 = vmul.f32 %v1175, %v1177
  %v1179 = vadd.f32 %v1175, %v1178
  %vm1180 = vweird.f32 %v1174
  %vm1181 = vweird.f32 %v1175
  %vm1182 = vmor %vm1180, %vm1181
  %v1183 = vsel %vm1182, %v1175, %v1179
  %v1184 = vand.u32 2147483647, %v1174
  %vm1185 = vcmp.eq.f32.partialorder %v1184, 8.507059e+37
  %v1186 = vand.u32 %v1174, 2147483648
  %v1187 = vor.u32 1.1754944e-38, %v1186
  %v1188 = vsel %vm1185, %v1187, %v1183
  %v1189 = vmul.f32 1.0, %v1188
  %v1190 = vxor.u32 %v1168, 2147483648
  %v1191 = vmul.f32 %v1190, 1.442695
  %v1192 = vpow.pop %v1191
  %v1193 = vadd.f32 %v1192, 1.0
  %v1194 = vrcp.pop %v1193
  %v1195 = vmul.f32 %v1193, %v1194
  %v1196 = vsub.f32 1.0, %v1195
  %v1197 = vmul.f32 %v1194, %v1196
  %v1198 = vadd.f32 %v1194, %v1197
  %vm1199 = vweird.f32 %v1193
  %vm1200 = vweird.f32 %v1194
  %vm1201 = vmor %vm1199, %vm1200
  %v1202 = vsel %vm1201, %v1194, %v1198
  %v1203 = vand.u32 2147483647, %v1193
  %vm1204 = vcmp.eq.f32.partialorder %v1203, 8.507059e+37
  %v1205 = vand.u32 %v1193, 2147483648
  %v1206 = vor.u32 1.1754944e-38, %v1205
  %v1207 = vsel %vm1204, %v1206, %v1202
  %v1208 = vmul.f32 1.0, %v1207
  %v1209 = vtanh.pop %v1169
  %v1210 = vxor.u32 %v1170, 2147483648
  %v1211 = vmul.f32 %v1210, 1.442695
  %v1212 = vpow.pop %v1211
  %v1213 = vadd.f32 %v1212, 1.0
  %v1214 = vrcp.pop %v1213
  %v1215 = vmul.f32 %v1213, %v1214
  %v1216 = vsub.f32 1.0, %v1215
  %v1217 = vmul.f32 %v1214, %v1216
  %v1218 = vadd.f32 %v1214, %v1217
  %vm1219 = vweird.f32 %v1213
  %vm1220 = vweird.f32 %v1214
  %vm1221 = vmor %vm1219, %vm1220
  %v1222 = vsel %vm1221, %v1214, %v1218
  %v1223 = vand.u32 2147483647, %v1213
  %vm1224 = vcmp.eq.f32.partialorder %v1223, 8.507059e+37
  %v1225 = vand.u32 %v1213, 2147483648
  %v1226 = vor.u32 1.1754944e-38, %v1225
  %v1227 = vsel %vm1224, %v1226, %v1222
  %v1228 = vmul.f32 1.0, %v1227
  %v1229 = vmul.f32 %v1208, %v1100
  %v1230 = vmul.f32 %v1189, %v1209
  %v1231 = vadd.f32 %v1229, %v1230
  %v1232 = vtanh.pop %v1231
  %v1233 = vmul.f32 %v1228, %v1232
  %v1234 = vpack.c.bf16 %v1233, %v1233
  %s1235 = scalar_lea.vmem [#allocation3], 20
  %1236 = vst [vmem:[%s1235] sm:$0xf] %v1234
  %s1237 = smul.u32 6, 4
  %s1238 = smul.addr %s1237, 4
  %s1239 = scalar_lea.vmem [#allocation2], %s1238
  %v1240 = vld [vmem:[%s1239] sm:$0xff]
  %v1241 = vld [vmem:[%s1239 + $0x8] sm:$0xff]
  %1242 = vmatpush.bf16.msra.mxu0 %v421
  %1243 = vmatpush.bf16.msra.mxu0 %v417
  %1244 = vmatpush.bf16.msra.mxu0 %v413
  %1245 = vmatpush.bf16.msra.mxu0 %v409
  %1246 = vmatpush.bf16.msra.mxu0 %v405
  %1247 = vmatpush.bf16.msra.mxu0 %v401
  %1248 = vmatpush.bf16.msra.mxu0 %v397
  %1249 = vmatpush.bf16.msra.mxu0 %v393
  %1250 = vmatmul.bf16.gmra.mxu0 %v1234
  %v1251 = vpop.f32.mrf.mxu0
  %v1252 = vadd.f32 0.0, %v1251
  %v1253 = vpop.f32.mrf.mxu0
  %1254 = vdwg.mxu0
  %1255 = vmatpush.bf16.msra.mxu0 %v422
  %1256 = vmatpush.bf16.msra.mxu0 %v418
  %1257 = vmatpush.bf16.msra.mxu0 %v414
  %1258 = vmatpush.bf16.msra.mxu0 %v410
  %1259 = vmatpush.bf16.msra.mxu0 %v406
  %1260 = vmatpush.bf16.msra.mxu0 %v402
  %1261 = vmatpush.bf16.msra.mxu0 %v398
  %1262 = vmatpush.bf16.msra.mxu0 %v394
  %1263 = vmatmul.bf16.gmra.mxu0 %v1234
  %v1264 = vpop.f32.mrf.mxu0
  %v1265 = vadd.f32 0.0, %v1264
  %v1266 = vpop.f32.mrf.mxu0
  %1267 = vdwg.mxu0
  %1268 = vmatpush.bf16.msra.mxu0 %v423
  %1269 = vmatpush.bf16.msra.mxu0 %v419
  %1270 = vmatpush.bf16.msra.mxu0 %v415
  %1271 = vmatpush.bf16.msra.mxu0 %v411
  %1272 = vmatpush.bf16.msra.mxu0 %v407
  %1273 = vmatpush.bf16.msra.mxu0 %v403
  %1274 = vmatpush.bf16.msra.mxu0 %v399
  %1275 = vmatpush.bf16.msra.mxu0 %v395
  %1276 = vmatmul.bf16.gmra.mxu0 %v1234
  %v1277 = vpop.f32.mrf.mxu0
  %v1278 = vadd.f32 0.0, %v1277
  %v1279 = vpop.f32.mrf.mxu0
  %1280 = vdwg.mxu0
  %1281 = vmatpush.bf16.msra.mxu0 %v424
  %1282 = vmatpush.bf16.msra.mxu0 %v420
  %1283 = vmatpush.bf16.msra.mxu0 %v416
  %1284 = vmatpush.bf16.msra.mxu0 %v412
  %1285 = vmatpush.bf16.msra.mxu0 %v408
  %1286 = vmatpush.bf16.msra.mxu0 %v404
  %1287 = vmatpush.bf16.msra.mxu0 %v400
  %1288 = vmatpush.bf16.msra.mxu0 %v396
  %1289 = vmatmul.bf16.gmra.mxu0 %v1234
  %v1290 = vpop.f32.mrf.mxu0
  %v1291 = vadd.f32 0.0, %v1290
  %v1292 = vpop.f32.mrf.mxu0
  %1293 = vdwg.mxu0
  %v1294 = vunpack.c.l.bf16 %v1240
  %v1295 = vunpack.c.h.bf16 %v1240
  %v1296 = vunpack.c.l.bf16 %v1241
  %v1297 = vunpack.c.h.bf16 %v1241
  %v1298 = vadd.f32 %v1294, %v1252
  %v1299 = vadd.f32 %v1295, %v1265
  %v1300 = vadd.f32 %v1296, %v1278
  %v1301 = vadd.f32 %v1297, %v1291
  %v1302 = vxor.u32 %v1298, 2147483648
  %v1303 = vmul.f32 %v1302, 1.442695
  %v1304 = vpow.pop %v1303
  %v1305 = vadd.f32 %v1304, 1.0
  %v1306 = vrcp.pop %v1305
  %v1307 = vmul.f32 %v1305, %v1306
  %v1308 = vsub.f32 1.0, %v1307
  %v1309 = vmul.f32 %v1306, %v1308
  %v1310 = vadd.f32 %v1306, %v1309
  %vm1311 = vweird.f32 %v1305
  %vm1312 = vweird.f32 %v1306
  %vm1313 = vmor %vm1311, %vm1312
  %v1314 = vsel %vm1313, %v1306, %v1310
  %v1315 = vand.u32 2147483647, %v1305
  %vm1316 = vcmp.eq.f32.partialorder %v1315, 8.507059e+37
  %v1317 = vand.u32 %v1305, 2147483648
  %v1318 = vor.u32 1.1754944e-38, %v1317
  %v1319 = vsel %vm1316, %v1318, %v1314
  %v1320 = vmul.f32 1.0, %v1319
  %v1321 = vxor.u32 %v1299, 2147483648
  %v1322 = vmul.f32 %v1321, 1.442695
  %v1323 = vpow.pop %v1322
  %v1324 = vadd.f32 %v1323, 1.0
  %v1325 = vrcp.pop %v1324
  %v1326 = vmul.f32 %v1324, %v1325
  %v1327 = vsub.f32 1.0, %v1326
  %v1328 = vmul.f32 %v1325, %v1327
  %v1329 = vadd.f32 %v1325, %v1328
  %vm1330 = vweird.f32 %v1324
  %vm1331 = vweird.f32 %v1325
  %vm1332 = vmor %vm1330, %vm1331
  %v1333 = vsel %vm1332, %v1325, %v1329
  %v1334 = vand.u32 2147483647, %v1324
  %vm1335 = vcmp.eq.f32.partialorder %v1334, 8.507059e+37
  %v1336 = vand.u32 %v1324, 2147483648
  %v1337 = vor.u32 1.1754944e-38, %v1336
  %v1338 = vsel %vm1335, %v1337, %v1333
  %v1339 = vmul.f32 1.0, %v1338
  %v1340 = vtanh.pop %v1300
  %v1341 = vxor.u32 %v1301, 2147483648
  %v1342 = vmul.f32 %v1341, 1.442695
  %v1343 = vpow.pop %v1342
  %v1344 = vadd.f32 %v1343, 1.0
  %v1345 = vrcp.pop %v1344
  %v1346 = vmul.f32 %v1344, %v1345
  %v1347 = vsub.f32 1.0, %v1346
  %v1348 = vmul.f32 %v1345, %v1347
  %v1349 = vadd.f32 %v1345, %v1348
  %vm1350 = vweird.f32 %v1344
  %vm1351 = vweird.f32 %v1345
  %vm1352 = vmor %vm1350, %vm1351
  %v1353 = vsel %vm1352, %v1345, %v1349
  %v1354 = vand.u32 2147483647, %v1344
  %vm1355 = vcmp.eq.f32.partialorder %v1354, 8.507059e+37
  %v1356 = vand.u32 %v1344, 2147483648
  %v1357 = vor.u32 1.1754944e-38, %v1356
  %v1358 = vsel %vm1355, %v1357, %v1353
  %v1359 = vmul.f32 1.0, %v1358
  %v1360 = vmul.f32 %v1339, %v1231
  %v1361 = vmul.f32 %v1320, %v1340
  %v1362 = vadd.f32 %v1360, %v1361
  %v1363 = vtanh.pop %v1362
  %v1364 = vmul.f32 %v1359, %v1363
  %v1365 = vpack.c.bf16 %v1364, %v1364
  %s1366 = scalar_lea.vmem [#allocation3], 24
  %1367 = vst [vmem:[%s1366] sm:$0xf] %v1365
  %v1368 = vld [vmem:[#allocation3] sm:$0xf]
  %v1369 = vld [vmem:[#allocation3 + $0x4] sm:$0xf]
  %v1370 = vld [vmem:[#allocation3 + $0x8] sm:$0xf]
  %v1371 = vld [vmem:[#allocation3 + $0xc] sm:$0xf]
  %v1372 = vld [vmem:[#allocation3 + $0x10] sm:$0xf]
  %v1373 = vld [vmem:[#allocation3 + $0x14] sm:$0xf]
  %v1374 = vld [vmem:[#allocation3 + $0x18] sm:$0xf]
  %v1375 = vunpack.c.l.bf16 %v1368
  %v1376 = vunpack.c.l.bf16 %v1369
  %v1377 = vunpack.c.l.bf16 %v1370
  %v1378 = vunpack.c.l.bf16 %v1371
  %v1379 = vunpack.c.l.bf16 %v1372
  %v1380 = vunpack.c.l.bf16 %v1373
  %v1381 = vunpack.c.l.bf16 %v1374
  %v1382 = vld [vmem:[%s4] sm:$0xf]
  %v1383 = vld [vmem:[%s4 + $0x4] sm:$0xf]
  %v1384 = vld [vmem:[%s4 + $0x8] sm:$0xf]
  %v1385 = vld [vmem:[%s4 + $0xc] sm:$0xf]
  %v1386 = vld [vmem:[%s4 + $0x10] sm:$0xf]
  %v1387 = vld [vmem:[%s4 + $0x14] sm:$0xf]
  %v1388 = vld [vmem:[%s4 + $0x18] sm:$0xf]
  %v1389 = vunpack.c.l.bf16 %v1382
  %v1390 = vunpack.c.l.bf16 %v1383
  %v1391 = vunpack.c.l.bf16 %v1384
  %v1392 = vunpack.c.l.bf16 %v1385
  %v1393 = vunpack.c.l.bf16 %v1386
  %v1394 = vunpack.c.l.bf16 %v1387
  %v1395 = vunpack.c.l.bf16 %v1388
  %v1396 = vmul.f32 %v1375, %v1389
  %v1397 = vmul.f32 %v1376, %v1390
  %v1398 = vmul.f32 %v1377, %v1391
  %v1399 = vmul.f32 %v1378, %v1392
  %v1400 = vmul.f32 %v1379, %v1393
  %v1401 = vmul.f32 %v1380, %v1394
  %v1402 = vmul.f32 %v1381, %v1395
  %1403 = vadd.xlane.f32.xlu0 %v1396
  %v1404 = vpop.xlane.xlu0 %1403
  %1405 = vadd.xlane.f32.xlu0 %v1397
  %v1406 = vpop.xlane.xlu0 %1405
  %1407 = vadd.xlane.f32.xlu0 %v1398
  %v1408 = vpop.xlane.xlu0 %1407
  %1409 = vadd.xlane.f32.xlu0 %v1399
  %v1410 = vpop.xlane.xlu0 %1409
  %1411 = vadd.xlane.f32.xlu0 %v1400
  %v1412 = vpop.xlane.xlu0 %1411
  %1413 = vadd.xlane.f32.xlu0 %v1401
  %v1414 = vpop.xlane.xlu0 %1413
  %1415 = vadd.xlane.f32.xlu0 %v1402
  %v1416 = vpop.xlane.xlu0 %1415
  %v1417 = vld [vmem:[%s5] sm:$0xff]
  %v1418 = vld [vmem:[%s5 + $0x8] sm:$0xff]
  %v1419 = vld [vmem:[%s5 + $0x10] sm:$0xff]
  %v1420 = vld [vmem:[%s5 + $0x18] sm:$0xff]
  %v1421 = vld [vmem:[%s5 + $0x20] sm:$0xff]
  %v1422 = vld [vmem:[%s5 + $0x28] sm:$0xff]
  %v1423 = vld [vmem:[%s5 + $0x30] sm:$0xff]
  %v1424 = vadd.f32 %v1404, %v1417
  %v1425 = vadd.f32 %v1406, %v1418
  %v1426 = vadd.f32 %v1408, %v1419
  %v1427 = vadd.f32 %v1410, %v1420
  %v1428 = vadd.f32 %v1412, %v1421
  %v1429 = vadd.f32 %v1414, %v1422
  %v1430 = vadd.f32 %v1416, %v1423
  %v1431 = vxor.u32 %v1424, 2147483648
  %v1432 = vxor.u32 %v1425, 2147483648
  %v1433 = vxor.u32 %v1426, 2147483648
  %v1434 = vxor.u32 %v1427, 2147483648
  %v1435 = vxor.u32 %v1428, 2147483648
  %v1436 = vxor.u32 %v1429, 2147483648
  %v1437 = vxor.u32 %v1430, 2147483648
  %v1438 = vmul.f32 %v1431, 1.442695
  %v1439 = vpow.pop %v1438
  %v1440 = vmul.f32 %v1432, 1.442695
  %v1441 = vpow.pop %v1440
  %v1442 = vmul.f32 %v1433, 1.442695
  %v1443 = vpow.pop %v1442
  %v1444 = vmul.f32 %v1434, 1.442695
  %v1445 = vpow.pop %v1444
  %v1446 = vmul.f32 %v1435, 1.442695
  %v1447 = vpow.pop %v1446
  %v1448 = vmul.f32 %v1436, 1.442695
  %v1449 = vpow.pop %v1448
  %v1450 = vmul.f32 %v1437, 1.442695
  %v1451 = vpow.pop %v1450
  %v1452 = vadd.f32 %v1439, 1.0
  %v1453 = vadd.f32 %v1441, 1.0
  %v1454 = vadd.f32 %v1443, 1.0
  %v1455 = vadd.f32 %v1445, 1.0
  %v1456 = vadd.f32 %v1447, 1.0
  %v1457 = vadd.f32 %v1449, 1.0
  %v1458 = vadd.f32 %v1451, 1.0
  %v1459 = vrcp.pop %v1452
  %v1460 = vmul.f32 %v1452, %v1459
  %v1461 = vsub.f32 1.0, %v1460
  %v1462 = vmul.f32 %v1459, %v1461
  %v1463 = vadd.f32 %v1459, %v1462
  %vm1464 = vweird.f32 %v1452
  %vm1465 = vweird.f32 %v1459
  %vm1466 = vmor %vm1464, %vm1465
  %v1467 = vsel %vm1466, %v1459, %v1463
  %v1468 = vand.u32 2147483647, %v1452
  %vm1469 = vcmp.eq.f32.partialorder %v1468, 8.507059e+37
  %v1470 = vand.u32 %v1452, 2147483648
  %v1471 = vor.u32 1.1754944e-38, %v1470
  %v1472 = vsel %vm1469, %v1471, %v1467
  %v1473 = vmul.f32 1.0, %v1472
  %v1474 = vrcp.pop %v1453
  %v1475 = vmul.f32 %v1453, %v1474
  %v1476 = vsub.f32 1.0, %v1475
  %v1477 = vmul.f32 %v1474, %v1476
  %v1478 = vadd.f32 %v1474, %v1477
  %vm1479 = vweird.f32 %v1453
  %vm1480 = vweird.f32 %v1474
  %vm1481 = vmor %vm1479, %vm1480
  %v1482 = vsel %vm1481, %v1474, %v1478
  %v1483 = vand.u32 2147483647, %v1453
  %vm1484 = vcmp.eq.f32.partialorder %v1483, 8.507059e+37
  %v1485 = vand.u32 %v1453, 2147483648
  %v1486 = vor.u32 1.1754944e-38, %v1485
  %v1487 = vsel %vm1484, %v1486, %v1482
  %v1488 = vmul.f32 1.0, %v1487
  %v1489 = vrcp.pop %v1454
  %v1490 = vmul.f32 %v1454, %v1489
  %v1491 = vsub.f32 1.0, %v1490
  %v1492 = vmul.f32 %v1489, %v1491
  %v1493 = vadd.f32 %v1489, %v1492
  %vm1494 = vweird.f32 %v1454
  %vm1495 = vweird.f32 %v1489
  %vm1496 = vmor %vm1494, %vm1495
  %v1497 = vsel %vm1496, %v1489, %v1493
  %v1498 = vand.u32 2147483647, %v1454
  %vm1499 = vcmp.eq.f32.partialorder %v1498, 8.507059e+37
  %v1500 = vand.u32 %v1454, 2147483648
  %v1501 = vor.u32 1.1754944e-38, %v1500
  %v1502 = vsel %vm1499, %v1501, %v1497
  %v1503 = vmul.f32 1.0, %v1502
  %v1504 = vrcp.pop %v1455
  %v1505 = vmul.f32 %v1455, %v1504
  %v1506 = vsub.f32 1.0, %v1505
  %v1507 = vmul.f32 %v1504, %v1506
  %v1508 = vadd.f32 %v1504, %v1507
  %vm1509 = vweird.f32 %v1455
  %vm1510 = vweird.f32 %v1504
  %vm1511 = vmor %vm1509, %vm1510
  %v1512 = vsel %vm1511, %v1504, %v1508
  %v1513 = vand.u32 2147483647, %v1455
  %vm1514 = vcmp.eq.f32.partialorder %v1513, 8.507059e+37
  %v1515 = vand.u32 %v1455, 2147483648
  %v1516 = vor.u32 1.1754944e-38, %v1515
  %v1517 = vsel %vm1514, %v1516, %v1512
  %v1518 = vmul.f32 1.0, %v1517
  %v1519 = vrcp.pop %v1456
  %v1520 = vmul.f32 %v1456, %v1519
  %v1521 = vsub.f32 1.0, %v1520
  %v1522 = vmul.f32 %v1519, %v1521
  %v1523 = vadd.f32 %v1519, %v1522
  %vm1524 = vweird.f32 %v1456
  %vm1525 = vweird.f32 %v1519
  %vm1526 = vmor %vm1524, %vm1525
  %v1527 = vsel %vm1526, %v1519, %v1523
  %v1528 = vand.u32 2147483647, %v1456
  %vm1529 = vcmp.eq.f32.partialorder %v1528, 8.507059e+37
  %v1530 = vand.u32 %v1456, 2147483648
  %v1531 = vor.u32 1.1754944e-38, %v1530
  %v1532 = vsel %vm1529, %v1531, %v1527
  %v1533 = vmul.f32 1.0, %v1532
  %v1534 = vrcp.pop %v1457
  %v1535 = vmul.f32 %v1457, %v1534
  %v1536 = vsub.f32 1.0, %v1535
  %v1537 = vmul.f32 %v1534, %v1536
  %v1538 = vadd.f32 %v1534, %v1537
  %vm1539 = vweird.f32 %v1457
  %vm1540 = vweird.f32 %v1534
  %vm1541 = vmor %vm1539, %vm1540
  %v1542 = vsel %vm1541, %v1534, %v1538
  %v1543 = vand.u32 2147483647, %v1457
  %vm1544 = vcmp.eq.f32.partialorder %v1543, 8.507059e+37
  %v1545 = vand.u32 %v1457, 2147483648
  %v1546 = vor.u32 1.1754944e-38, %v1545
  %v1547 = vsel %vm1544, %v1546, %v1542
  %v1548 = vmul.f32 1.0, %v1547
  %v1549 = vrcp.pop %v1458
  %v1550 = vmul.f32 %v1458, %v1549
  %v1551 = vsub.f32 1.0, %v1550
  %v1552 = vmul.f32 %v1549, %v1551
  %v1553 = vadd.f32 %v1549, %v1552
  %vm1554 = vweird.f32 %v1458
  %vm1555 = vweird.f32 %v1549
  %vm1556 = vmor %vm1554, %vm1555
  %v1557 = vsel %vm1556, %v1549, %v1553
  %v1558 = vand.u32 2147483647, %v1458
  %vm1559 = vcmp.eq.f32.partialorder %v1558, 8.507059e+37
  %v1560 = vand.u32 %v1458, 2147483648
  %v1561 = vor.u32 1.1754944e-38, %v1560
  %v1562 = vsel %vm1559, %v1561, %v1557
  %v1563 = vmul.f32 1.0, %v1562
  %vm1564 = vcmask 7168
  %1565 = vst.msk [vmem:[%s6] sm:$0xff] %vm1564, %v1473
  %1566 = vst.msk [vmem:[%s6 + $0x8] sm:$0xff] %vm1564, %v1488
  %1567 = vst.msk [vmem:[%s6 + $0x10] sm:$0xff] %vm1564, %v1503
  %1568 = vst.msk [vmem:[%s6 + $0x18] sm:$0xff] %vm1564, %v1518
  %1569 = vst.msk [vmem:[%s6 + $0x20] sm:$0xff] %vm1564, %v1533
  %1570 = vst.msk [vmem:[%s6 + $0x28] sm:$0xff] %vm1564, %v1548
  %1571 = vst.msk [vmem:[%s6 + $0x30] sm:$0xff] %vm1564, %v1563
  // Predicated region
  $region26: #{dkt_forward.1} parent=0 // pred_check
    _
  $region27: #{dkt_forward.1} parent=0 // pred_check_branch
    %1573 = sbr.rel (0) target = $region29
  $region28: #{dkt_forward.1} parent=0 // pred_region
    _
  $region29: #{dkt_forward.1} parent=0 // pred_fallthru
    _
  // Predicated region
  $region30: #{dkt_forward.1} parent=0 // pred_check
    _
  $region31: #{dkt_forward.1} parent=0 // pred_check_branch
    %1575 = sbr.rel (0) target = $region33
  $region32: #{dkt_forward.1} parent=0 // pred_region
    _
  $region33: #{dkt_forward.1} parent=0 // pred_fallthru
    _

</llo_original>
